<compile_context>
chip_gen: v6e
topology: v6e:2x2x1
jax: 0.10.0
libtpu: 0.0.40
codegen_flags: <defaults>
</compile_context>

<pallas_src>
from math import sqrt

import jax
import jax.numpy as jnp
from jax import lax
from jax.experimental import pallas as pl
from jax.experimental.pallas import tpu as pltpu


def get_groups(channels: int) -> int:
    divisors = []
    for i in range(1, int(sqrt(channels)) + 1):
        if channels % i == 0:
            divisors.append(i)
            other = channels // i
            if i != other:
                divisors.append(other)
    return sorted(divisors)[len(divisors) // 2]


def _round_up(a: int, m: int) -> int:
    return (a + m - 1) // m * m


def _vmem_limit_bytes() -> int:
    # Per-generation budget: ~3/4 of physical VMEM, capped at 100 MiB
    # (v5e/v6e: 128 MiB physical -> 96 MiB, v7x: 64 MiB -> 48 MiB).
    try:
        cap = int(pltpu.get_tpu_info().vmem_capacity_bytes)
    except Exception:
        cap = 128 * 1024 * 1024
    return int(min(cap * 3 // 4, 100 * 1024 * 1024))


# ---------------------------------------------------------------------------
# Fused kernel: two (conv3x3 + bias + swish + GroupNorm) layers per image.
# Wide-conv layout: flat lanes over H*(W+2); the 2 pad columns per row are
# throwaway and are masked out of the statistics / sliced off on the host.
# ---------------------------------------------------------------------------
def make_fused_block_kernel(cin_p: int, cout_p: int, h: int, wd: int,
                            eps: float = 1e-5):
    wp = wd + 2            # padded width
    l1 = h * wp            # wide spatial extent (incl. 2 throwaway cols / row)

    def kernel(x_ref, col_ref, w1_ref, b1_ref, g1_ref, be1_ref,
               w2_ref, b2_ref, g2_ref, be2_ref, gmat_ref,
               o_ref, slab1, slab2, ypad, x2buf):
        col = col_ref[...]                     # (1, L1) int32: column within row
        valid = col < wd                       # valid (non-pad) wide columns

        def stage_taps(src, slab_ref, cpad):
            # src: (cpad, >= 2*wp+2+L1) value.  Stage the 9 lane-shifted tap
            # views into one stacked-K slab; row offsets are sublane-tile
            # aligned because cpad is padded to the dtype sublane multiple.
            for kh in range(3):
                for kw in range(3):
                    t = kh * 3 + kw
                    s = kh * wp + kw
                    slab_ref[t * cpad:(t + 1) * cpad, :] = src[:, s:s + l1]

        def conv_swish_gn(slab_ref, w_ref, b_ref, gam_ref, bet_ref):
            # Single MXU matmul, K = 9 * C_in, f32 accumulation.
            y = jnp.dot(w_ref[...], slab_ref[...],
                        preferred_element_type=jnp.float32)      # (Cout_p, L1)
            y = y + b_ref[...]
            y = y * jax.nn.sigmoid(y)                            # CustomSwish
            y = jnp.where(valid, y, 0.0)                         # robust masking
            # GroupNorm stats on the MXU (no XLU lane reductions).
            ones_col = jnp.ones((l1, 1), jnp.float32)
            s = jnp.dot(y, ones_col, preferred_element_type=jnp.float32)
            sq = jnp.dot(y * y, ones_col, preferred_element_type=jnp.float32)
            mean = jnp.dot(gmat_ref[...], s, preferred_element_type=jnp.float32)
            ex2 = jnp.dot(gmat_ref[...], sq, preferred_element_type=jnp.float32)
            # TODO(synk): switch to a two-pass variance when HW tiling lands.
            var = jnp.maximum(ex2 - mean * mean, 0.0)
            scale = lax.rsqrt(var + eps) * gam_ref[...]
            shift = bet_ref[...] - mean * scale
            return y * scale + shift                             # (Cout_p, L1) f32

        # ------------------------- layer 1 ---------------------------------
        stage_taps(x_ref[0], slab1, cin_p)
        y1 = conv_swish_gn(slab1, w1_ref, b1_ref, g1_ref, be1_ref)

        # ---- in-VMEM reflection pad of y1 for layer 2 (never touches HBM) --
        ypad[...] = jnp.zeros_like(ypad)
        ypad[:, 3:3 + l1] = y1
        sr1 = ypad[:, 2:2 + l1]        # sr1[l] = y1[l-1]
        sl1 = ypad[:, 4:4 + l1]        # sl1[l] = y1[l+1]
        sr3 = ypad[:, 0:l1]            # sr3[l] = y1[l-3]
        # Column reflection inside each width-(W+2) row segment.
        zc = jnp.where(col == 0, sl1, jnp.where(col == wd + 1, sr3, sr1))
        zc = zc.astype(x2buf.dtype)
        # Row reflection: [row 1, rows 0..H-1, row H-2, zero tail].
        x2buf[:, 0:wp] = zc[:, wp:2 * wp]
        x2buf[:, wp:wp + l1] = zc
        x2buf[:, wp + l1:wp + l1 + wp] = zc[:, (h - 2) * wp:(h - 1) * wp]
        x2buf[:, wp + l1 + wp:] = jnp.zeros((x2buf.shape[0], wp), x2buf.dtype)

        # ------------------------- layer 2 ---------------------------------
        stage_taps(x2buf[...], slab2, cout_p)
        y2 = conv_swish_gn(slab2, w2_ref, b2_ref, g2_ref, be2_ref)
        o_ref[0] = y2.astype(o_ref.dtype)

    return kernel


# ---------------------------------------------------------------------------
# Host wrapper
# ---------------------------------------------------------------------------
def weight_norm(v, g):
    # PyTorch weight_norm (dim=0): w = g * v / ||v||, norm over all dims but 0.
    norm = jnp.sqrt(jnp.sum(v * v, axis=(1, 2, 3), keepdims=True))
    return g[:, None, None, None] * v / norm


def unet_conv_block(x, params, out_size, *, mxu_dtype=jnp.bfloat16, eps=1e-5):
    """x: (N, Cin, H, W) NCHW -> (N, out_size, H, W) f32."""
    n, cin, h, wd = x.shape
    cout = out_size
    groups = get_groups(out_size)
    wp, hp = wd + 2, h + 2
    l1 = h * wp
    lp1 = hp * wp + wp                    # flat padded input + tail for tap slices
    spc = 8 * (4 // jnp.dtype(mxu_dtype).itemsize)   # sublane tile: 8 f32 / 16 bf16
    cin_p = _round_up(cin, spc)
    cout_p = _round_up(cout, spc)

    w1 = weight_norm(params["v1"], params["g1"])      # (Cout, Cin, 3, 3)
    w2 = weight_norm(params["v2"], params["g2"])      # (Cout, Cout, 3, 3)

    def pack_weight(wt, ci_p):
        # (Cout, Ci, 3, 3) -> (Cout_p, 9*Ci_p), K laid out as [tap, channel].
        co, ci = wt.shape[0], wt.shape[1]
        wt = jnp.pad(wt, ((0, cout_p - co), (0, ci_p - ci), (0, 0), (0, 0)))
        return (jnp.transpose(wt, (0, 2, 3, 1))
                .reshape(cout_p, 9 * ci_p).astype(mxu_dtype))

    w1f = pack_weight(w1, cin_p)
    w2f = pack_weight(w2, cout_p)

    def col_param(p):
        return jnp.pad(p.astype(jnp.float32), (0, cout_p - cout)).reshape(cout_p, 1)

    # Group-membership matrix with 1/(elements per group) folded in; padded
    # channels belong to no group so they neither pollute stats nor get output.
    cg = cout // groups
    gid = jnp.where(jnp.arange(cout_p) < cout, jnp.arange(cout_p) // cg, -1)
    gmat = ((gid[:, None] == gid[None, :]) & (gid[:, None] >= 0)).astype(jnp.float32)
    gmat = gmat / float(cg * h * wd)

    # Layer-1 reflection pad + channel pad + flatten (only host relayout left).
    xp = jnp.pad(x, ((0, 0), (0, 0), (1, 1), (1, 1)), mode="reflect")
    xp = jnp.pad(xp, ((0, 0), (0, cin_p - cin), (0, 0), (0, 0)))
    x_flat = jnp.pad(xp.reshape(n, cin_p, hp * wp),
                     ((0, 0), (0, 0), (0, lp1 - hp * wp))).astype(mxu_dtype)

    col_id = (jnp.arange(l1, dtype=jnp.int32) % wp).reshape(1, l1)

    itemsize = jnp.dtype(mxu_dtype).itemsize
    flops = 2 * n * l1 * (9 * cin_p * cout_p + 9 * cout_p * cout_p + 2 * cout_p)
    bytes_accessed = (n * cin_p * lp1 * itemsize + n * cout_p * l1 * 4
                      + (w1f.size + w2f.size) * itemsize)
    cost = pl.CostEstimate(flops=int(flops),
                           transcendentals=int(2 * n * cout_p * l1),
                           bytes_accessed=int(bytes_accessed))

    const = lambda i: (0, 0)
    out_wide = pl.pallas_call(
        make_fused_block_kernel(cin_p, cout_p, h, wd, eps),
        out_shape=jax.ShapeDtypeStruct((n, cout_p, l1), jnp.float32),
        grid=(n,),
        in_specs=[
            pl.BlockSpec((1, cin_p, lp1), lambda i: (i, 0, 0)),
            pl.BlockSpec((1, l1), const),
            pl.BlockSpec((cout_p, 9 * cin_p), const),     # weights stay resident
            pl.BlockSpec((cout_p, 1), const),
            pl.BlockSpec((cout_p, 1), const),
            pl.BlockSpec((cout_p, 1), const),
            pl.BlockSpec((cout_p, 9 * cout_p), const),
            pl.BlockSpec((cout_p, 1), const),
            pl.BlockSpec((cout_p, 1), const),
            pl.BlockSpec((cout_p, 1), const),
            pl.BlockSpec((cout_p, cout_p), const),
        ],
        out_specs=pl.BlockSpec((1, cout_p, l1), lambda i: (i, 0, 0)),
        scratch_shapes=[
            pltpu.VMEM((9 * cin_p, l1), mxu_dtype),          # layer-1 tap slab
            pltpu.VMEM((9 * cout_p, l1), mxu_dtype),         # layer-2 tap slab
            pltpu.VMEM((cout_p, l1 + 8), jnp.float32),       # shifted-view staging
            pltpu.VMEM((cout_p, (h + 3) * wp), mxu_dtype),   # layer-2 padded input
        ],
        compiler_params=pltpu.CompilerParams(
            dimension_semantics=("parallel",),
            vmem_limit_bytes=_vmem_limit_bytes()),
        cost_estimate=cost,
    )(x_flat, col_id, w1f,
      col_param(params["b1"]), col_param(params["gamma1"]), col_param(params["beta1"]),
      w2f,
      col_param(params["b2"]), col_param(params["gamma2"]), col_param(params["beta2"]),
      gmat)

    # Drop channel padding and the 2 throwaway columns per row of the wide layout.
    return out_wide[:, :cout].reshape(n, cout, h, wp)[:, :, :, :wd]


# ---------------------------------------------------------------------------
# Parameter init + pure-JAX reference
# ---------------------------------------------------------------------------
def init_params(key, in_size, out_size, kernel_size=3):
    ks = jax.random.split(key, 8)

    def conv_params(kv, kg, kb, cin):
        v = jax.random.normal(kv, (out_size, cin, kernel_size, kernel_size),
                              jnp.float32) * 0.1
        g = jax.random.uniform(kg, (out_size,), jnp.float32, 0.5, 1.5)
        b = jax.random.normal(kb, (out_size,), jnp.float32) * 0.05
        return v, g, b

    v1, g1, b1 = conv_params(ks[0], ks[1], ks[2], in_size)
    v2, g2, b2 = conv_params(ks[3], ks[4], ks[5], out_size)
    return dict(v1=v1, g1=g1, b1=b1,
                gamma1=jnp.ones((out_size,), jnp.float32),
                beta1=jnp.zeros((out_size,), jnp.float32),
                v2=v2, g2=g2, b2=b2,
                gamma2=jnp.ones((out_size,), jnp.float32),
                beta2=jnp.zeros((out_size,), jnp.float32))


def ref_unet_conv_block(x, params, out_size):
    groups = get_groups(out_size)

    def conv(x, w, b):
        xp = jnp.pad(x, ((0, 0), (0, 0), (1, 1), (1, 1)), mode="reflect")
        y = lax.conv_general_dilated(
            xp, w, (1, 1), "VALID",
            dimension_numbers=("NCHW", "OIHW", "NCHW"))
        return y + b[None, :, None, None]

    def swish(x):
        return x * jax.nn.sigmoid(x)

    def gn(x, gamma, beta, g, eps=1e-5):
        n, c, h, w = x.shape
        xg = x.reshape(n, g, -1)
        m = xg.mean(axis=2, keepdims=True)
        v = ((xg - m) ** 2).mean(axis=2, keepdims=True)
        xn = ((xg - m) / jnp.sqrt(v + eps)).reshape(n, c, h, w)
        return xn * gamma[None, :, None, None] + beta[None, :, None, None]

    w1 = weight_norm(params["v1"], params["g1"])
    y = gn(swish(conv(x, w1, params["b1"])), params["gamma1"],
           params["beta1"], groups)
    w2 = weight_norm(params["v2"], params["g2"])
    y = gn(swish(conv(y, w2, params["b2"])), params["gamma2"],
           params["beta2"], groups)
    return y


if __name__ == "__main__":
    key = jax.random.PRNGKey(0)
    kx, kp = jax.random.split(key)

    N, IN_SIZE, OUT_SIZE, H, W = 2, 4, 8, 16, 16
    x = jax.random.normal(kx, (N, IN_SIZE, H, W), jnp.float32)
    params = init_params(kp, IN_SIZE, OUT_SIZE)

    ref = jax.block_until_ready(ref_unet_conv_block(x, params, OUT_SIZE))

    # f32 MXU operands: strict check against the pure-JAX reference.
    run_f32 = jax.jit(lambda x, p: unet_conv_block(x, p, OUT_SIZE,
                                                   mxu_dtype=jnp.float32))
    out_f32 = jax.block_until_ready(run_f32(x, params))
    assert out_f32.shape == (N, OUT_SIZE, H, W)
    err = float(jnp.max(jnp.abs(out_f32 - ref)))
    assert jnp.allclose(out_f32, ref, rtol=2e-3, atol=2e-3), f"f32 err={err}"

    # Default path: bf16 MXU operands + f32 accumulation (fast on all gens).
    run_bf16 = jax.jit(lambda x, p: unet_conv_block(x, p, OUT_SIZE))
    out_bf16 = jax.block_until_ready(run_bf16(x, params))
    assert out_bf16.shape == (N, OUT_SIZE, H, W)
    err_bf = float(jnp.max(jnp.abs(out_bf16 - ref)))
    assert jnp.allclose(out_bf16, ref, rtol=5e-2, atol=5e-2), f"bf16 err={err_bf}"

    print("KERNEL_OK")
</pallas_src>

<mosaic_0001>
module attributes {stable_mosaic.version = 11 : i64} {
  func.func @kernel(%arg0: i32, %arg1: memref<1x8x342xf32, #tpu.memory_space<vmem>>, %arg2: memref<1x288xi32, #tpu.memory_space<vmem>>, %arg3: memref<8x72xf32, #tpu.memory_space<vmem>>, %arg4: memref<8x1xf32, #tpu.memory_space<vmem>>, %arg5: memref<8x1xf32, #tpu.memory_space<vmem>>, %arg6: memref<8x1xf32, #tpu.memory_space<vmem>>, %arg7: memref<8x72xf32, #tpu.memory_space<vmem>>, %arg8: memref<8x1xf32, #tpu.memory_space<vmem>>, %arg9: memref<8x1xf32, #tpu.memory_space<vmem>>, %arg10: memref<8x1xf32, #tpu.memory_space<vmem>>, %arg11: memref<8x8xf32, #tpu.memory_space<vmem>>, %arg12: memref<1x8x288xf32, #tpu.memory_space<vmem>>, %arg13: memref<72x288xf32, #tpu.memory_space<vmem>>, %arg14: memref<72x288xf32, #tpu.memory_space<vmem>>, %arg15: memref<8x296xf32, #tpu.memory_space<vmem>>, %arg16: memref<8x342xf32, #tpu.memory_space<vmem>>) attributes {dimension_semantics = [#tpu.dimension_semantics<parallel>], iteration_bounds = array<i64: 2>, scalar_prefetch = 0 : i64, scratch_operands = 4 : i64, tpu.core_type = #tpu.core_type<tc>, window_params = [{transform_indices = @transform_0, window_bounds = array<i64: 1, 8, 342>}, {pipeline_mode = #tpu.pipeline_mode<synchronous>, transform_indices = @transform_1, window_bounds = array<i64: 1, 288>}, {pipeline_mode = #tpu.pipeline_mode<synchronous>, transform_indices = @transform_2, window_bounds = array<i64: 8, 72>}, {pipeline_mode = #tpu.pipeline_mode<synchronous>, transform_indices = @transform_3, window_bounds = array<i64: 8, 1>}, {pipeline_mode = #tpu.pipeline_mode<synchronous>, transform_indices = @transform_4, window_bounds = array<i64: 8, 1>}, {pipeline_mode = #tpu.pipeline_mode<synchronous>, transform_indices = @transform_5, window_bounds = array<i64: 8, 1>}, {pipeline_mode = #tpu.pipeline_mode<synchronous>, transform_indices = @transform_6, window_bounds = array<i64: 8, 72>}, {pipeline_mode = #tpu.pipeline_mode<synchronous>, transform_indices = @transform_7, window_bounds = array<i64: 8, 1>}, {pipeline_mode = #tpu.pipeline_mode<synchronous>, transform_indices = @transform_8, window_bounds = array<i64: 8, 1>}, {pipeline_mode = #tpu.pipeline_mode<synchronous>, transform_indices = @transform_9, window_bounds = array<i64: 8, 1>}, {pipeline_mode = #tpu.pipeline_mode<synchronous>, transform_indices = @transform_10, window_bounds = array<i64: 8, 8>}, {transform_indices = @transform_11, window_bounds = array<i64: 1, 8, 288>}]} {
    %c0 = arith.constant 0 : index
    %c0_0 = arith.constant 0 : index
    %0 = vector.load %arg2[%c0, %c0_0] : memref<1x288xi32, #tpu.memory_space<vmem>>, vector<1x288xi32>
    %c16_i32 = arith.constant 16 : i32
    %1 = vector.broadcast %c16_i32 : i32 to vector<1x288xi32>
    %2 = arith.cmpi slt, %0, %1 : vector<1x288xi32>
    %c0_1 = arith.constant 0 : index
    %c0_2 = arith.constant 0 : index
    %c0_3 = arith.constant 0 : index
    %3 = vector.load %arg1[%c0_1, %c0_2, %c0_3] : memref<1x8x342xf32, #tpu.memory_space<vmem>>, vector<1x8x342xf32>
    %4 = vector.shape_cast %3 : vector<1x8x342xf32> to vector<8x342xf32>
    %5 = vector.extract_strided_slice %4 {offsets = [0, 0], sizes = [8, 288], strides = [1, 1]} : vector<8x342xf32> to vector<8x288xf32>
    %c0_4 = arith.constant 0 : index
    %c0_5 = arith.constant 0 : index
    %6 = vector.load %arg13[%c0_4, %c0_5] : memref<72x288xf32, #tpu.memory_space<vmem>>, vector<8x288xf32>
    tpu.vector_store %arg13[%c0_4, %c0_5], %5 {strides = array<i32>} : memref<72x288xf32, #tpu.memory_space<vmem>>, vector<8x288xf32>,
    %7 = vector.extract_strided_slice %4 {offsets = [0, 1], sizes = [8, 288], strides = [1, 1]} : vector<8x342xf32> to vector<8x288xf32>
    %c8 = arith.constant 8 : index
    %c0_6 = arith.constant 0 : index
    %8 = vector.load %arg13[%c8, %c0_6] : memref<72x288xf32, #tpu.memory_space<vmem>>, vector<8x288xf32>
    tpu.vector_store %arg13[%c8, %c0_6], %7 {strides = array<i32>} : memref<72x288xf32, #tpu.memory_space<vmem>>, vector<8x288xf32>,
    %9 = vector.extract_strided_slice %4 {offsets = [0, 2], sizes = [8, 288], strides = [1, 1]} : vector<8x342xf32> to vector<8x288xf32>
    %c16 = arith.constant 16 : index
    %c0_7 = arith.constant 0 : index
    %10 = vector.load %arg13[%c16, %c0_7] : memref<72x288xf32, #tpu.memory_space<vmem>>, vector<8x288xf32>
    tpu.vector_store %arg13[%c16, %c0_7], %9 {strides = array<i32>} : memref<72x288xf32, #tpu.memory_space<vmem>>, vector<8x288xf32>,
    %11 = vector.extract_strided_slice %4 {offsets = [0, 18], sizes = [8, 288], strides = [1, 1]} : vector<8x342xf32> to vector<8x288xf32>
    %c24 = arith.constant 24 : index
    %c0_8 = arith.constant 0 : index
    %12 = vector.load %arg13[%c24, %c0_8] : memref<72x288xf32, #tpu.memory_space<vmem>>, vector<8x288xf32>
    tpu.vector_store %arg13[%c24, %c0_8], %11 {strides = array<i32>} : memref<72x288xf32, #tpu.memory_space<vmem>>, vector<8x288xf32>,
    %13 = vector.extract_strided_slice %4 {offsets = [0, 19], sizes = [8, 288], strides = [1, 1]} : vector<8x342xf32> to vector<8x288xf32>
    %c32 = arith.constant 32 : index
    %c0_9 = arith.constant 0 : index
    %14 = vector.load %arg13[%c32, %c0_9] : memref<72x288xf32, #tpu.memory_space<vmem>>, vector<8x288xf32>
    tpu.vector_store %arg13[%c32, %c0_9], %13 {strides = array<i32>} : memref<72x288xf32, #tpu.memory_space<vmem>>, vector<8x288xf32>,
    %15 = vector.extract_strided_slice %4 {offsets = [0, 20], sizes = [8, 288], strides = [1, 1]} : vector<8x342xf32> to vector<8x288xf32>
    %c40 = arith.constant 40 : index
    %c0_10 = arith.constant 0 : index
    %16 = vector.load %arg13[%c40, %c0_10] : memref<72x288xf32, #tpu.memory_space<vmem>>, vector<8x288xf32>
    tpu.vector_store %arg13[%c40, %c0_10], %15 {strides = array<i32>} : memref<72x288xf32, #tpu.memory_space<vmem>>, vector<8x288xf32>,
    %17 = vector.extract_strided_slice %4 {offsets = [0, 36], sizes = [8, 288], strides = [1, 1]} : vector<8x342xf32> to vector<8x288xf32>
    %c48 = arith.constant 48 : index
    %c0_11 = arith.constant 0 : index
    %18 = vector.load %arg13[%c48, %c0_11] : memref<72x288xf32, #tpu.memory_space<vmem>>, vector<8x288xf32>
    tpu.vector_store %arg13[%c48, %c0_11], %17 {strides = array<i32>} : memref<72x288xf32, #tpu.memory_space<vmem>>, vector<8x288xf32>,
    %19 = vector.extract_strided_slice %4 {offsets = [0, 37], sizes = [8, 288], strides = [1, 1]} : vector<8x342xf32> to vector<8x288xf32>
    %c56 = arith.constant 56 : index
    %c0_12 = arith.constant 0 : index
    %20 = vector.load %arg13[%c56, %c0_12] : memref<72x288xf32, #tpu.memory_space<vmem>>, vector<8x288xf32>
    tpu.vector_store %arg13[%c56, %c0_12], %19 {strides = array<i32>} : memref<72x288xf32, #tpu.memory_space<vmem>>, vector<8x288xf32>,
    %21 = vector.extract_strided_slice %4 {offsets = [0, 38], sizes = [8, 288], strides = [1, 1]} : vector<8x342xf32> to vector<8x288xf32>
    %c64 = arith.constant 64 : index
    %c0_13 = arith.constant 0 : index
    %22 = vector.load %arg13[%c64, %c0_13] : memref<72x288xf32, #tpu.memory_space<vmem>>, vector<8x288xf32>
    tpu.vector_store %arg13[%c64, %c0_13], %21 {strides = array<i32>} : memref<72x288xf32, #tpu.memory_space<vmem>>, vector<8x288xf32>,
    %c0_14 = arith.constant 0 : index
    %c0_15 = arith.constant 0 : index
    %23 = vector.load %arg3[%c0_14, %c0_15] : memref<8x72xf32, #tpu.memory_space<vmem>>, vector<8x72xf32>
    %c0_16 = arith.constant 0 : index
    %c0_17 = arith.constant 0 : index
    %24 = vector.load %arg13[%c0_16, %c0_17] : memref<72x288xf32, #tpu.memory_space<vmem>>, vector<72x288xf32>
    %cst = arith.constant dense<0.000000e+00> : vector<8x288xf32>
    %25 = tpu.matmul %23, %24, %cst {dimension_numbers = #tpu.dot_dimension_numbers<[1], [0], [0], [1], [0, 0, 1, 1], [], []>} : vector<8x72xf32>, vector<72x288xf32>, vector<8x288xf32> -> vector<8x288xf32>
    %c0_18 = arith.constant 0 : index
    %c0_19 = arith.constant 0 : index
    %26 = vector.load %arg4[%c0_18, %c0_19] : memref<8x1xf32, #tpu.memory_space<vmem>>, vector<8x1xf32>
    %27 = vector.broadcast %26 : vector<8x1xf32> to vector<8x288xf32>
    %28 = arith.addf %25, %27 : vector<8x288xf32>
    %29 = arith.negf %28 : vector<8x288xf32>
    %30 = math.exp %29 : vector<8x288xf32>
    %cst_20 = arith.constant 1.000000e+00 : f32
    %31 = vector.broadcast %cst_20 : f32 to vector<8x288xf32>
    %32 = arith.addf %31, %30 : vector<8x288xf32>
    %33 = arith.divf %31, %32 : vector<8x288xf32>
    %34 = arith.mulf %28, %33 : vector<8x288xf32>
    %cst_21 = arith.constant 0.000000e+00 : f32
    %35 = vector.shape_cast %2 : vector<1x288xi1> to vector<1x288xi1>
    %36 = vector.broadcast %35 : vector<1x288xi1> to vector<8x288xi1>
    %37 = vector.broadcast %cst_21 : f32 to vector<8x288xf32>
    %38 = arith.select %36, %34, %37 : vector<8x288xi1>, vector<8x288xf32>
    %cst_22 = arith.constant 1.000000e+00 : f32
    %39 = vector.broadcast %cst_22 : f32 to vector<288x1xf32>
    %cst_23 = arith.constant dense<0.000000e+00> : vector<8x1xf32>
    %40 = tpu.matmul %38, %39, %cst_23 {dimension_numbers = #tpu.dot_dimension_numbers<[1], [0], [0], [1], [0, 0, 1, 1], [], []>} : vector<8x288xf32>, vector<288x1xf32>, vector<8x1xf32> -> vector<8x1xf32>
    %41 = arith.mulf %38, %38 : vector<8x288xf32>
    %cst_24 = arith.constant dense<0.000000e+00> : vector<8x1xf32>
    %42 = tpu.matmul %41, %39, %cst_24 {dimension_numbers = #tpu.dot_dimension_numbers<[1], [0], [0], [1], [0, 0, 1, 1], [], []>} : vector<8x288xf32>, vector<288x1xf32>, vector<8x1xf32> -> vector<8x1xf32>
    %c0_25 = arith.constant 0 : index
    %c0_26 = arith.constant 0 : index
    %43 = vector.load %arg11[%c0_25, %c0_26] : memref<8x8xf32, #tpu.memory_space<vmem>>, vector<8x8xf32>
    %cst_27 = arith.constant dense<0.000000e+00> : vector<8x1xf32>
    %44 = tpu.matmul %43, %40, %cst_27 {dimension_numbers = #tpu.dot_dimension_numbers<[1], [0], [0], [1], [0, 0, 1, 1], [], []>} : vector<8x8xf32>, vector<8x1xf32>, vector<8x1xf32> -> vector<8x1xf32>
    %c0_28 = arith.constant 0 : index
    %c0_29 = arith.constant 0 : index
    %45 = vector.load %arg11[%c0_28, %c0_29] : memref<8x8xf32, #tpu.memory_space<vmem>>, vector<8x8xf32>
    %cst_30 = arith.constant dense<0.000000e+00> : vector<8x1xf32>
    %46 = tpu.matmul %45, %42, %cst_30 {dimension_numbers = #tpu.dot_dimension_numbers<[1], [0], [0], [1], [0, 0, 1, 1], [], []>} : vector<8x8xf32>, vector<8x1xf32>, vector<8x1xf32> -> vector<8x1xf32>
    %47 = arith.mulf %44, %44 : vector<8x1xf32>
    %48 = arith.subf %46, %47 : vector<8x1xf32>
    %cst_31 = arith.constant 0.000000e+00 : f32
    %49 = vector.broadcast %cst_31 : f32 to vector<8x1xf32>
    %50 = arith.maximumf %48, %49 : vector<8x1xf32>
    %cst_32 = arith.constant 9.99999974E-6 : f32
    %51 = vector.broadcast %cst_32 : f32 to vector<8x1xf32>
    %52 = arith.addf %50, %51 : vector<8x1xf32>
    %53 = math.rsqrt %52 : vector<8x1xf32>
    %c0_33 = arith.constant 0 : index
    %c0_34 = arith.constant 0 : index
    %54 = vector.load %arg5[%c0_33, %c0_34] : memref<8x1xf32, #tpu.memory_space<vmem>>, vector<8x1xf32>
    %55 = arith.mulf %53, %54 : vector<8x1xf32>
    %c0_35 = arith.constant 0 : index
    %c0_36 = arith.constant 0 : index
    %56 = vector.load %arg6[%c0_35, %c0_36] : memref<8x1xf32, #tpu.memory_space<vmem>>, vector<8x1xf32>
    %57 = arith.mulf %44, %55 : vector<8x1xf32>
    %58 = arith.subf %56, %57 : vector<8x1xf32>
    %59 = vector.broadcast %55 : vector<8x1xf32> to vector<8x288xf32>
    %60 = arith.mulf %38, %59 : vector<8x288xf32>
    %61 = vector.broadcast %58 : vector<8x1xf32> to vector<8x288xf32>
    %62 = arith.addf %60, %61 : vector<8x288xf32>
    %cst_37 = arith.constant 0.000000e+00 : f32
    %63 = vector.broadcast %cst_37 : f32 to vector<8x296xf32>
    %c0_38 = arith.constant 0 : index
    %c0_39 = arith.constant 0 : index
    %64 = vector.load %arg15[%c0_38, %c0_39] : memref<8x296xf32, #tpu.memory_space<vmem>>, vector<8x296xf32>
    tpu.vector_store %arg15[%c0_38, %c0_39], %63 {strides = array<i32>} : memref<8x296xf32, #tpu.memory_space<vmem>>, vector<8x296xf32>,
    %c0_40 = arith.constant 0 : index
    %c3 = arith.constant 3 : index
    %65 = vector.load %arg15[%c0_40, %c3] : memref<8x296xf32, #tpu.memory_space<vmem>>, vector<8x288xf32>
    tpu.vector_store %arg15[%c0_40, %c3], %62 {strides = array<i32>} : memref<8x296xf32, #tpu.memory_space<vmem>>, vector<8x288xf32>,
    %c0_41 = arith.constant 0 : index
    %c2 = arith.constant 2 : index
    %66 = vector.load %arg15[%c0_41, %c2] : memref<8x296xf32, #tpu.memory_space<vmem>>, vector<8x288xf32>
    %c0_42 = arith.constant 0 : index
    %c4 = arith.constant 4 : index
    %67 = vector.load %arg15[%c0_42, %c4] : memref<8x296xf32, #tpu.memory_space<vmem>>, vector<8x288xf32>
    %c0_43 = arith.constant 0 : index
    %c0_44 = arith.constant 0 : index
    %68 = vector.load %arg15[%c0_43, %c0_44] : memref<8x296xf32, #tpu.memory_space<vmem>>, vector<8x288xf32>
    %c0_i32 = arith.constant 0 : i32
    %69 = vector.broadcast %c0_i32 : i32 to vector<1x288xi32>
    %70 = arith.cmpi eq, %0, %69 : vector<1x288xi32>
    %c17_i32 = arith.constant 17 : i32
    %71 = vector.broadcast %c17_i32 : i32 to vector<1x288xi32>
    %72 = arith.cmpi eq, %0, %71 : vector<1x288xi32>
    %73 = vector.shape_cast %72 : vector<1x288xi1> to vector<1x288xi1>
    %74 = vector.broadcast %73 : vector<1x288xi1> to vector<8x288xi1>
    %75 = arith.select %74, %68, %66 : vector<8x288xi1>, vector<8x288xf32>
    %76 = vector.shape_cast %70 : vector<1x288xi1> to vector<1x288xi1>
    %77 = vector.broadcast %76 : vector<1x288xi1> to vector<8x288xi1>
    %78 = arith.select %77, %67, %75 : vector<8x288xi1>, vector<8x288xf32>
    %79 = vector.extract_strided_slice %78 {offsets = [0, 18], sizes = [8, 18], strides = [1, 1]} : vector<8x288xf32> to vector<8x18xf32>
    %c0_45 = arith.constant 0 : index
    %c0_46 = arith.constant 0 : index
    %80 = vector.load %arg16[%c0_45, %c0_46] : memref<8x342xf32, #tpu.memory_space<vmem>>, vector<8x18xf32>
    tpu.vector_store %arg16[%c0_45, %c0_46], %79 {strides = array<i32>} : memref<8x342xf32, #tpu.memory_space<vmem>>, vector<8x18xf32>,
    %c0_47 = arith.constant 0 : index
    %c18 = arith.constant 18 : index
    %81 = vector.load %arg16[%c0_47, %c18] : memref<8x342xf32, #tpu.memory_space<vmem>>, vector<8x288xf32>
    tpu.vector_store %arg16[%c0_47, %c18], %78 {strides = array<i32>} : memref<8x342xf32, #tpu.memory_space<vmem>>, vector<8x288xf32>,
    %82 = vector.extract_strided_slice %78 {offsets = [0, 252], sizes = [8, 18], strides = [1, 1]} : vector<8x288xf32> to vector<8x18xf32>
    %c0_48 = arith.constant 0 : index
    %c306 = arith.constant 306 : index
    %83 = vector.load %arg16[%c0_48, %c306] : memref<8x342xf32, #tpu.memory_space<vmem>>, vector<8x18xf32>
    tpu.vector_store %arg16[%c0_48, %c306], %82 {strides = array<i32>} : memref<8x342xf32, #tpu.memory_space<vmem>>, vector<8x18xf32>,
    %cst_49 = arith.constant 0.000000e+00 : f32
    %84 = vector.broadcast %cst_49 : f32 to vector<8x18xf32>
    %c0_50 = arith.constant 0 : index
    %c324 = arith.constant 324 : index
    %85 = vector.load %arg16[%c0_50, %c324] : memref<8x342xf32, #tpu.memory_space<vmem>>, vector<8x18xf32>
    tpu.vector_store %arg16[%c0_50, %c324], %84 {strides = array<i32>} : memref<8x342xf32, #tpu.memory_space<vmem>>, vector<8x18xf32>,
    %c0_51 = arith.constant 0 : index
    %c0_52 = arith.constant 0 : index
    %86 = vector.load %arg16[%c0_51, %c0_52] : memref<8x342xf32, #tpu.memory_space<vmem>>, vector<8x342xf32>
    %87 = vector.extract_strided_slice %86 {offsets = [0, 0], sizes = [8, 288], strides = [1, 1]} : vector<8x342xf32> to vector<8x288xf32>
    %c0_53 = arith.constant 0 : index
    %c0_54 = arith.constant 0 : index
    %88 = vector.load %arg14[%c0_53, %c0_54] : memref<72x288xf32, #tpu.memory_space<vmem>>, vector<8x288xf32>
    tpu.vector_store %arg14[%c0_53, %c0_54], %87 {strides = array<i32>} : memref<72x288xf32, #tpu.memory_space<vmem>>, vector<8x288xf32>,
    %89 = vector.extract_strided_slice %86 {offsets = [0, 1], sizes = [8, 288], strides = [1, 1]} : vector<8x342xf32> to vector<8x288xf32>
    %c8_55 = arith.constant 8 : index
    %c0_56 = arith.constant 0 : index
    %90 = vector.load %arg14[%c8_55, %c0_56] : memref<72x288xf32, #tpu.memory_space<vmem>>, vector<8x288xf32>
    tpu.vector_store %arg14[%c8_55, %c0_56], %89 {strides = array<i32>} : memref<72x288xf32, #tpu.memory_space<vmem>>, vector<8x288xf32>,
    %91 = vector.extract_strided_slice %86 {offsets = [0, 2], sizes = [8, 288], strides = [1, 1]} : vector<8x342xf32> to vector<8x288xf32>
    %c16_57 = arith.constant 16 : index
    %c0_58 = arith.constant 0 : index
    %92 = vector.load %arg14[%c16_57, %c0_58] : memref<72x288xf32, #tpu.memory_space<vmem>>, vector<8x288xf32>
    tpu.vector_store %arg14[%c16_57, %c0_58], %91 {strides = array<i32>} : memref<72x288xf32, #tpu.memory_space<vmem>>, vector<8x288xf32>,
    %93 = vector.extract_strided_slice %86 {offsets = [0, 18], sizes = [8, 288], strides = [1, 1]} : vector<8x342xf32> to vector<8x288xf32>
    %c24_59 = arith.constant 24 : index
    %c0_60 = arith.constant 0 : index
    %94 = vector.load %arg14[%c24_59, %c0_60] : memref<72x288xf32, #tpu.memory_space<vmem>>, vector<8x288xf32>
    tpu.vector_store %arg14[%c24_59, %c0_60], %93 {strides = array<i32>} : memref<72x288xf32, #tpu.memory_space<vmem>>, vector<8x288xf32>,
    %95 = vector.extract_strided_slice %86 {offsets = [0, 19], sizes = [8, 288], strides = [1, 1]} : vector<8x342xf32> to vector<8x288xf32>
    %c32_61 = arith.constant 32 : index
    %c0_62 = arith.constant 0 : index
    %96 = vector.load %arg14[%c32_61, %c0_62] : memref<72x288xf32, #tpu.memory_space<vmem>>, vector<8x288xf32>
    tpu.vector_store %arg14[%c32_61, %c0_62], %95 {strides = array<i32>} : memref<72x288xf32, #tpu.memory_space<vmem>>, vector<8x288xf32>,
    %97 = vector.extract_strided_slice %86 {offsets = [0, 20], sizes = [8, 288], strides = [1, 1]} : vector<8x342xf32> to vector<8x288xf32>
    %c40_63 = arith.constant 40 : index
    %c0_64 = arith.constant 0 : index
    %98 = vector.load %arg14[%c40_63, %c0_64] : memref<72x288xf32, #tpu.memory_space<vmem>>, vector<8x288xf32>
    tpu.vector_store %arg14[%c40_63, %c0_64], %97 {strides = array<i32>} : memref<72x288xf32, #tpu.memory_space<vmem>>, vector<8x288xf32>,
    %99 = vector.extract_strided_slice %86 {offsets = [0, 36], sizes = [8, 288], strides = [1, 1]} : vector<8x342xf32> to vector<8x288xf32>
    %c48_65 = arith.constant 48 : index
    %c0_66 = arith.constant 0 : index
    %100 = vector.load %arg14[%c48_65, %c0_66] : memref<72x288xf32, #tpu.memory_space<vmem>>, vector<8x288xf32>
    tpu.vector_store %arg14[%c48_65, %c0_66], %99 {strides = array<i32>} : memref<72x288xf32, #tpu.memory_space<vmem>>, vector<8x288xf32>,
    %101 = vector.extract_strided_slice %86 {offsets = [0, 37], sizes = [8, 288], strides = [1, 1]} : vector<8x342xf32> to vector<8x288xf32>
    %c56_67 = arith.constant 56 : index
    %c0_68 = arith.constant 0 : index
    %102 = vector.load %arg14[%c56_67, %c0_68] : memref<72x288xf32, #tpu.memory_space<vmem>>, vector<8x288xf32>
    tpu.vector_store %arg14[%c56_67, %c0_68], %101 {strides = array<i32>} : memref<72x288xf32, #tpu.memory_space<vmem>>, vector<8x288xf32>,
    %103 = vector.extract_strided_slice %86 {offsets = [0, 38], sizes = [8, 288], strides = [1, 1]} : vector<8x342xf32> to vector<8x288xf32>
    %c64_69 = arith.constant 64 : index
    %c0_70 = arith.constant 0 : index
    %104 = vector.load %arg14[%c64_69, %c0_70] : memref<72x288xf32, #tpu.memory_space<vmem>>, vector<8x288xf32>
    tpu.vector_store %arg14[%c64_69, %c0_70], %103 {strides = array<i32>} : memref<72x288xf32, #tpu.memory_space<vmem>>, vector<8x288xf32>,
    %c0_71 = arith.constant 0 : index
    %c0_72 = arith.constant 0 : index
    %105 = vector.load %arg7[%c0_71, %c0_72] : memref<8x72xf32, #tpu.memory_space<vmem>>, vector<8x72xf32>
    %c0_73 = arith.constant 0 : index
    %c0_74 = arith.constant 0 : index
    %106 = vector.load %arg14[%c0_73, %c0_74] : memref<72x288xf32, #tpu.memory_space<vmem>>, vector<72x288xf32>
    %cst_75 = arith.constant dense<0.000000e+00> : vector<8x288xf32>
    %107 = tpu.matmul %105, %106, %cst_75 {dimension_numbers = #tpu.dot_dimension_numbers<[1], [0], [0], [1], [0, 0, 1, 1], [], []>} : vector<8x72xf32>, vector<72x288xf32>, vector<8x288xf32> -> vector<8x288xf32>
    %c0_76 = arith.constant 0 : index
    %c0_77 = arith.constant 0 : index
    %108 = vector.load %arg8[%c0_76, %c0_77] : memref<8x1xf32, #tpu.memory_space<vmem>>, vector<8x1xf32>
    %109 = vector.broadcast %108 : vector<8x1xf32> to vector<8x288xf32>
    %110 = arith.addf %107, %109 : vector<8x288xf32>
    %111 = arith.negf %110 : vector<8x288xf32>
    %112 = math.exp %111 : vector<8x288xf32>
    %cst_78 = arith.constant 1.000000e+00 : f32
    %113 = vector.broadcast %cst_78 : f32 to vector<8x288xf32>
    %114 = arith.addf %113, %112 : vector<8x288xf32>
    %115 = arith.divf %113, %114 : vector<8x288xf32>
    %116 = arith.mulf %110, %115 : vector<8x288xf32>
    %cst_79 = arith.constant 0.000000e+00 : f32
    %117 = vector.shape_cast %2 : vector<1x288xi1> to vector<1x288xi1>
    %118 = vector.broadcast %117 : vector<1x288xi1> to vector<8x288xi1>
    %119 = vector.broadcast %cst_79 : f32 to vector<8x288xf32>
    %120 = arith.select %118, %116, %119 : vector<8x288xi1>, vector<8x288xf32>
    %cst_80 = arith.constant 1.000000e+00 : f32
    %121 = vector.broadcast %cst_80 : f32 to vector<288x1xf32>
    %cst_81 = arith.constant dense<0.000000e+00> : vector<8x1xf32>
    %122 = tpu.matmul %120, %121, %cst_81 {dimension_numbers = #tpu.dot_dimension_numbers<[1], [0], [0], [1], [0, 0, 1, 1], [], []>} : vector<8x288xf32>, vector<288x1xf32>, vector<8x1xf32> -> vector<8x1xf32>
    %123 = arith.mulf %120, %120 : vector<8x288xf32>
    %cst_82 = arith.constant dense<0.000000e+00> : vector<8x1xf32>
    %124 = tpu.matmul %123, %121, %cst_82 {dimension_numbers = #tpu.dot_dimension_numbers<[1], [0], [0], [1], [0, 0, 1, 1], [], []>} : vector<8x288xf32>, vector<288x1xf32>, vector<8x1xf32> -> vector<8x1xf32>
    %c0_83 = arith.constant 0 : index
    %c0_84 = arith.constant 0 : index
    %125 = vector.load %arg11[%c0_83, %c0_84] : memref<8x8xf32, #tpu.memory_space<vmem>>, vector<8x8xf32>
    %cst_85 = arith.constant dense<0.000000e+00> : vector<8x1xf32>
    %126 = tpu.matmul %125, %122, %cst_85 {dimension_numbers = #tpu.dot_dimension_numbers<[1], [0], [0], [1], [0, 0, 1, 1], [], []>} : vector<8x8xf32>, vector<8x1xf32>, vector<8x1xf32> -> vector<8x1xf32>
    %c0_86 = arith.constant 0 : index
    %c0_87 = arith.constant 0 : index
    %127 = vector.load %arg11[%c0_86, %c0_87] : memref<8x8xf32, #tpu.memory_space<vmem>>, vector<8x8xf32>
    %cst_88 = arith.constant dense<0.000000e+00> : vector<8x1xf32>
    %128 = tpu.matmul %127, %124, %cst_88 {dimension_numbers = #tpu.dot_dimension_numbers<[1], [0], [0], [1], [0, 0, 1, 1], [], []>} : vector<8x8xf32>, vector<8x1xf32>, vector<8x1xf32> -> vector<8x1xf32>
    %129 = arith.mulf %126, %126 : vector<8x1xf32>
    %130 = arith.subf %128, %129 : vector<8x1xf32>
    %cst_89 = arith.constant 0.000000e+00 : f32
    %131 = vector.broadcast %cst_89 : f32 to vector<8x1xf32>
    %132 = arith.maximumf %130, %131 : vector<8x1xf32>
    %cst_90 = arith.constant 9.99999974E-6 : f32
    %133 = vector.broadcast %cst_90 : f32 to vector<8x1xf32>
    %134 = arith.addf %132, %133 : vector<8x1xf32>
    %135 = math.rsqrt %134 : vector<8x1xf32>
    %c0_91 = arith.constant 0 : index
    %c0_92 = arith.constant 0 : index
    %136 = vector.load %arg9[%c0_91, %c0_92] : memref<8x1xf32, #tpu.memory_space<vmem>>, vector<8x1xf32>
    %137 = arith.mulf %135, %136 : vector<8x1xf32>
    %c0_93 = arith.constant 0 : index
    %c0_94 = arith.constant 0 : index
    %138 = vector.load %arg10[%c0_93, %c0_94] : memref<8x1xf32, #tpu.memory_space<vmem>>, vector<8x1xf32>
    %139 = arith.mulf %126, %137 : vector<8x1xf32>
    %140 = arith.subf %138, %139 : vector<8x1xf32>
    %141 = vector.broadcast %137 : vector<8x1xf32> to vector<8x288xf32>
    %142 = arith.mulf %120, %141 : vector<8x288xf32>
    %143 = vector.broadcast %140 : vector<8x1xf32> to vector<8x288xf32>
    %144 = arith.addf %142, %143 : vector<8x288xf32>
    %c0_95 = arith.constant 0 : index
    %c0_96 = arith.constant 0 : index
    %c0_97 = arith.constant 0 : index
    %145 = vector.load %arg12[%c0_95, %c0_96, %c0_97] : memref<1x8x288xf32, #tpu.memory_space<vmem>>, vector<1x8x288xf32>
    %146 = vector.shape_cast %145 : vector<1x8x288xf32> to vector<8x288xf32>
    %147 = vector.shape_cast %144 : vector<8x288xf32> to vector<1x8x288xf32>
    tpu.vector_store %arg12[%c0_95, %c0_96, %c0_97], %147 {strides = array<i32>} : memref<1x8x288xf32, #tpu.memory_space<vmem>>, vector<1x8x288xf32>,
    return
  }
  func.func @transform_0(%arg0: i32) -> (i32, i32, i32) {
    %c0_i32 = arith.constant 0 : i32
    %c0_i32_0 = arith.constant 0 : i32
    %c0_i32_1 = arith.constant 0 : i32
    return %arg0, %c0_i32, %c0_i32_0 : i32, i32, i32
  }
  func.func @transform_1(%arg0: i32) -> (i32, i32) {
    %c0_i32 = arith.constant 0 : i32
    %c0_i32_0 = arith.constant 0 : i32
    %c0_i32_1 = arith.constant 0 : i32
    return %c0_i32, %c0_i32_0 : i32, i32
  }
  func.func @transform_2(%arg0: i32) -> (i32, i32) {
    %c0_i32 = arith.constant 0 : i32
    %c0_i32_0 = arith.constant 0 : i32
    %c0_i32_1 = arith.constant 0 : i32
    return %c0_i32, %c0_i32_0 : i32, i32
  }
  func.func @transform_3(%arg0: i32) -> (i32, i32) {
    %c0_i32 = arith.constant 0 : i32
    %c0_i32_0 = arith.constant 0 : i32
    %c0_i32_1 = arith.constant 0 : i32
    return %c0_i32, %c0_i32_0 : i32, i32
  }
  func.func @transform_4(%arg0: i32) -> (i32, i32) {
    %c0_i32 = arith.constant 0 : i32
    %c0_i32_0 = arith.constant 0 : i32
    %c0_i32_1 = arith.constant 0 : i32
    return %c0_i32, %c0_i32_0 : i32, i32
  }
  func.func @transform_5(%arg0: i32) -> (i32, i32) {
    %c0_i32 = arith.constant 0 : i32
    %c0_i32_0 = arith.constant 0 : i32
    %c0_i32_1 = arith.constant 0 : i32
    return %c0_i32, %c0_i32_0 : i32, i32
  }
  func.func @transform_6(%arg0: i32) -> (i32, i32) {
    %c0_i32 = arith.constant 0 : i32
    %c0_i32_0 = arith.constant 0 : i32
    %c0_i32_1 = arith.constant 0 : i32
    return %c0_i32, %c0_i32_0 : i32, i32
  }
  func.func @transform_7(%arg0: i32) -> (i32, i32) {
    %c0_i32 = arith.constant 0 : i32
    %c0_i32_0 = arith.constant 0 : i32
    %c0_i32_1 = arith.constant 0 : i32
    return %c0_i32, %c0_i32_0 : i32, i32
  }
  func.func @transform_8(%arg0: i32) -> (i32, i32) {
    %c0_i32 = arith.constant 0 : i32
    %c0_i32_0 = arith.constant 0 : i32
    %c0_i32_1 = arith.constant 0 : i32
    return %c0_i32, %c0_i32_0 : i32, i32
  }
  func.func @transform_9(%arg0: i32) -> (i32, i32) {
    %c0_i32 = arith.constant 0 : i32
    %c0_i32_0 = arith.constant 0 : i32
    %c0_i32_1 = arith.constant 0 : i32
    return %c0_i32, %c0_i32_0 : i32, i32
  }
  func.func @transform_10(%arg0: i32) -> (i32, i32) {
    %c0_i32 = arith.constant 0 : i32
    %c0_i32_0 = arith.constant 0 : i32
    %c0_i32_1 = arith.constant 0 : i32
    return %c0_i32, %c0_i32_0 : i32, i32
  }
  func.func @transform_11(%arg0: i32) -> (i32, i32, i32) {
    %c0_i32 = arith.constant 0 : i32
    %c0_i32_0 = arith.constant 0 : i32
    %c0_i32_1 = arith.constant 0 : i32
    return %arg0, %c0_i32, %c0_i32_0 : i32, i32, i32
  }
}

</mosaic_0001>

<llo_original>
// kernel: _lambda_.1
$region0: #{_lambda_.1}
  #allocation0 [shape = 'u32[]', space=smem, size = 0x4, offset = 0x4, fixed_abs, tag = 'smem constant byte address 0x4 - core index']
  #allocation1 [shape = 'u32[144,128]{1,0:T(1,128)}', space=vmem, size = 0x12000, scoped, tag = 'internal scratch']
  #allocation2 [shape = 'f32[72,288]{1,0:T(8,128)}', space=vmem, size = 0x1b000, scoped, tag = 'scratch operand']
  #allocation3 [shape = 'f32[72,288]{1,0:T(8,128)}', space=vmem, size = 0x1b000, scoped, tag = 'scratch operand']
  #allocation4 [shape = 'f32[8,296]{1,0:T(8,128)}', space=vmem, size = 0x3000, scoped, tag = 'scratch operand']
  #allocation5 [shape = 'f32[8,342]{1,0:T(8,128)}', space=vmem, size = 0x3000, scoped, tag = 'scratch operand']
  %s0 = inlined_call_operand.vmem [shape: f32[2,8,342], index: 0, kind: input, shape index: {}]
  %s1 = inlined_call_operand.vmem [shape: s32[1,288], index: 1, kind: input, shape index: {}]
  %s2 = inlined_call_operand.vmem [shape: f32[8,72], index: 2, kind: input, shape index: {}]
  %s3 = inlined_call_operand.vmem [shape: f32[8,1], index: 3, kind: input, shape index: {}]
  %s4 = inlined_call_operand.vmem [shape: f32[8,1], index: 4, kind: input, shape index: {}]
  %s5 = inlined_call_operand.vmem [shape: f32[8,1], index: 5, kind: input, shape index: {}]
  %s6 = inlined_call_operand.vmem [shape: f32[8,72], index: 6, kind: input, shape index: {}]
  %s7 = inlined_call_operand.vmem [shape: f32[8,1], index: 7, kind: input, shape index: {}]
  %s8 = inlined_call_operand.vmem [shape: f32[8,1], index: 8, kind: input, shape index: {}]
  %s9 = inlined_call_operand.vmem [shape: f32[8,1], index: 9, kind: input, shape index: {}]
  %s10 = inlined_call_operand.vmem [shape: f32[8,8], index: 10, kind: input, shape index: {}]
  %s11 = inlined_call_operand.vmem [shape: f32[2,8,288], index: 11, kind: output, shape index: {}]
  %s12 = sld [smem:[#allocation0]]
  $region77: #{_lambda_.1} parent=0
    _
  %s14 = ssub.s32 1, %s12
  %s15 = scalar_select 0, %s14, %s12
  loop: start=0, step=1, limit=4
  $region2: #{_lambda_.1} parent=0 // loop_pre_header
    _
  $region3: #{_lambda_.1} parent=0 // loop_header
    %s17 = sphi 0, %s21
    %p18 = scmp.ge.s32.totalorder %s17, 4
    %s27 = sphi 0, %s29
    %s30 = sphi 0, %s27
    %s31 = sphi 0, %s30
    %s47 = sphi 0, %s31
    %s51 = sphi 0, %s51
    %s53 = sphi 0, %s51
    %s54 = sphi 0, %s53
    %s68 = sphi 0, %s54
    %s72 = sphi 0, %s72
    %s74 = sphi 0, %s72
    %s75 = sphi 0, %s74
    %s89 = sphi 0, %s75
    %s93 = sphi 0, %s93
    %s95 = sphi 0, %s93
    %s96 = sphi 0, %s95
    %s110 = sphi 0, %s96
    %s114 = sphi 0, %s114
    %s116 = sphi 0, %s114
    %s117 = sphi 0, %s116
    %s131 = sphi 0, %s117
    %s135 = sphi 0, %s135
    %s137 = sphi 0, %s135
    %s138 = sphi 0, %s137
    %s152 = sphi 0, %s138
    %s156 = sphi 0, %s156
    %s158 = sphi 0, %s156
    %s159 = sphi 0, %s158
    %s173 = sphi 0, %s159
    %s177 = sphi 0, %s177
    %s179 = sphi 0, %s177
    %s180 = sphi 0, %s179
    %s194 = sphi 0, %s180
    %s198 = sphi 0, %s198
    %s200 = sphi 0, %s198
    %s201 = sphi 0, %s200
    %s215 = sphi 0, %s201
    %s219 = sphi 0, %s219
    %s221 = sphi 0, %s219
    %s222 = sphi 0, %s221
    %s236 = sphi 0, %s222
    %s240 = sphi 0, %s240
    %s242 = sphi 0, %s240
    %s243 = sphi 0, %s242
    %s257 = sphi 0, %s243
    %s263 = sphi 0, %s265
    %s266 = sphi 0, %s263
    %s267 = sphi 0, %s266
    %s283 = sphi 0, %s267
  $region4: #{_lambda_.1} parent=0 // loop_header_branch
    %20 = sbr.rel (%p18) target = $region8
  $region5: #{_lambda_.1} parent=0 // loop_body
    %s22 = ssub.s32 %s17, 1
    %s23 = ssub.s32 %s17, 2
    %s24 = sadd.s32 %s17, 1
    %s25 = ssub.s32 %s17, %s24
    %p26 = scmp.eq.s32.totalorder %s25, 0
    %s28 = sadd.s32 %s27, 1
    %s29 = scalar_select %p26, %s27, %s28
    %p32 = pneg %p26
    %p33 = scmp.eq.s32.totalorder %s17, 1
    %p34 = por %p32, %p33
    %p35 = scmp.ne.s32.totalorder %s27, %s30
    %p36 = scmp.eq.s32.totalorder %s17, 0
    %p37 = por %p35, %p36
    %p38 = scmp.ne.s32.totalorder %s27, %s30
    %p39 = scmp.eq.s32.totalorder %s22, 1
    %p40 = por %p38, %p39
    %p41 = scmp.ne.s32.totalorder %s30, %s31
    %p42 = scmp.eq.s32.totalorder %s22, 0
    %p43 = por %p41, %p42
    %p44 = scmp.ne.s32.totalorder %s30, %s31
    %p45 = scmp.eq.s32.totalorder %s23, 1
    %p46 = por %p44, %p45
    %p48 = scmp.ne.s32.totalorder %s31, %s47
    %p49 = scmp.eq.s32.totalorder %s23, 0
    %p50 = por %p48, %p49
    %s52 = sadd.s32 %s51, 1
    %p55 = scmp.eq.s32.totalorder %s17, 1
    %p56 = scmp.ne.s32.totalorder %s51, %s53
    %p57 = scmp.eq.s32.totalorder %s17, 0
    %p58 = por %p56, %p57
    %p59 = scmp.ne.s32.totalorder %s51, %s53
    %p60 = scmp.eq.s32.totalorder %s22, 1
    %p61 = por %p59, %p60
    %p62 = scmp.ne.s32.totalorder %s53, %s54
    %p63 = scmp.eq.s32.totalorder %s22, 0
    %p64 = por %p62, %p63
    %p65 = scmp.ne.s32.totalorder %s53, %s54
    %p66 = scmp.eq.s32.totalorder %s23, 1
    %p67 = por %p65, %p66
    %p69 = scmp.ne.s32.totalorder %s54, %s68
    %p70 = scmp.eq.s32.totalorder %s23, 0
    %p71 = por %p69, %p70
    %s73 = sadd.s32 %s72, 1
    %p76 = scmp.eq.s32.totalorder %s17, 1
    %p77 = scmp.ne.s32.totalorder %s72, %s74
    %p78 = scmp.eq.s32.totalorder %s17, 0
    %p79 = por %p77, %p78
    %p80 = scmp.ne.s32.totalorder %s72, %s74
    %p81 = scmp.eq.s32.totalorder %s22, 1
    %p82 = por %p80, %p81
    %p83 = scmp.ne.s32.totalorder %s74, %s75
    %p84 = scmp.eq.s32.totalorder %s22, 0
    %p85 = por %p83, %p84
    %p86 = scmp.ne.s32.totalorder %s74, %s75
    %p87 = scmp.eq.s32.totalorder %s23, 1
    %p88 = por %p86, %p87
    %p90 = scmp.ne.s32.totalorder %s75, %s89
    %p91 = scmp.eq.s32.totalorder %s23, 0
    %p92 = por %p90, %p91
    %s94 = sadd.s32 %s93, 1
    %p97 = scmp.eq.s32.totalorder %s17, 1
    %p98 = scmp.ne.s32.totalorder %s93, %s95
    %p99 = scmp.eq.s32.totalorder %s17, 0
    %p100 = por %p98, %p99
    %p101 = scmp.ne.s32.totalorder %s93, %s95
    %p102 = scmp.eq.s32.totalorder %s22, 1
    %p103 = por %p101, %p102
    %p104 = scmp.ne.s32.totalorder %s95, %s96
    %p105 = scmp.eq.s32.totalorder %s22, 0
    %p106 = por %p104, %p105
    %p107 = scmp.ne.s32.totalorder %s95, %s96
    %p108 = scmp.eq.s32.totalorder %s23, 1
    %p109 = por %p107, %p108
    %p111 = scmp.ne.s32.totalorder %s96, %s110
    %p112 = scmp.eq.s32.totalorder %s23, 0
    %p113 = por %p111, %p112
    %s115 = sadd.s32 %s114, 1
    %p118 = scmp.eq.s32.totalorder %s17, 1
    %p119 = scmp.ne.s32.totalorder %s114, %s116
    %p120 = scmp.eq.s32.totalorder %s17, 0
    %p121 = por %p119, %p120
    %p122 = scmp.ne.s32.totalorder %s114, %s116
    %p123 = scmp.eq.s32.totalorder %s22, 1
    %p124 = por %p122, %p123
    %p125 = scmp.ne.s32.totalorder %s116, %s117
    %p126 = scmp.eq.s32.totalorder %s22, 0
    %p127 = por %p125, %p126
    %p128 = scmp.ne.s32.totalorder %s116, %s117
    %p129 = scmp.eq.s32.totalorder %s23, 1
    %p130 = por %p128, %p129
    %p132 = scmp.ne.s32.totalorder %s117, %s131
    %p133 = scmp.eq.s32.totalorder %s23, 0
    %p134 = por %p132, %p133
    %s136 = sadd.s32 %s135, 1
    %p139 = scmp.eq.s32.totalorder %s17, 1
    %p140 = scmp.ne.s32.totalorder %s135, %s137
    %p141 = scmp.eq.s32.totalorder %s17, 0
    %p142 = por %p140, %p141
    %p143 = scmp.ne.s32.totalorder %s135, %s137
    %p144 = scmp.eq.s32.totalorder %s22, 1
    %p145 = por %p143, %p144
    %p146 = scmp.ne.s32.totalorder %s137, %s138
    %p147 = scmp.eq.s32.totalorder %s22, 0
    %p148 = por %p146, %p147
    %p149 = scmp.ne.s32.totalorder %s137, %s138
    %p150 = scmp.eq.s32.totalorder %s23, 1
    %p151 = por %p149, %p150
    %p153 = scmp.ne.s32.totalorder %s138, %s152
    %p154 = scmp.eq.s32.totalorder %s23, 0
    %p155 = por %p153, %p154
    %s157 = sadd.s32 %s156, 1
    %p160 = scmp.eq.s32.totalorder %s17, 1
    %p161 = scmp.ne.s32.totalorder %s156, %s158
    %p162 = scmp.eq.s32.totalorder %s17, 0
    %p163 = por %p161, %p162
    %p164 = scmp.ne.s32.totalorder %s156, %s158
    %p165 = scmp.eq.s32.totalorder %s22, 1
    %p166 = por %p164, %p165
    %p167 = scmp.ne.s32.totalorder %s158, %s159
    %p168 = scmp.eq.s32.totalorder %s22, 0
    %p169 = por %p167, %p168
    %p170 = scmp.ne.s32.totalorder %s158, %s159
    %p171 = scmp.eq.s32.totalorder %s23, 1
    %p172 = por %p170, %p171
    %p174 = scmp.ne.s32.totalorder %s159, %s173
    %p175 = scmp.eq.s32.totalorder %s23, 0
    %p176 = por %p174, %p175
    %s178 = sadd.s32 %s177, 1
    %p181 = scmp.eq.s32.totalorder %s17, 1
    %p182 = scmp.ne.s32.totalorder %s177, %s179
    %p183 = scmp.eq.s32.totalorder %s17, 0
    %p184 = por %p182, %p183
    %p185 = scmp.ne.s32.totalorder %s177, %s179
    %p186 = scmp.eq.s32.totalorder %s22, 1
    %p187 = por %p185, %p186
    %p188 = scmp.ne.s32.totalorder %s179, %s180
    %p189 = scmp.eq.s32.totalorder %s22, 0
    %p190 = por %p188, %p189
    %p191 = scmp.ne.s32.totalorder %s179, %s180
    %p192 = scmp.eq.s32.totalorder %s23, 1
    %p193 = por %p191, %p192
    %p195 = scmp.ne.s32.totalorder %s180, %s194
    %p196 = scmp.eq.s32.totalorder %s23, 0
    %p197 = por %p195, %p196
    %s199 = sadd.s32 %s198, 1
    %p202 = scmp.eq.s32.totalorder %s17, 1
    %p203 = scmp.ne.s32.totalorder %s198, %s200
    %p204 = scmp.eq.s32.totalorder %s17, 0
    %p205 = por %p203, %p204
    %p206 = scmp.ne.s32.totalorder %s198, %s200
    %p207 = scmp.eq.s32.totalorder %s22, 1
    %p208 = por %p206, %p207
    %p209 = scmp.ne.s32.totalorder %s200, %s201
    %p210 = scmp.eq.s32.totalorder %s22, 0
    %p211 = por %p209, %p210
    %p212 = scmp.ne.s32.totalorder %s200, %s201
    %p213 = scmp.eq.s32.totalorder %s23, 1
    %p214 = por %p212, %p213
    %p216 = scmp.ne.s32.totalorder %s201, %s215
    %p217 = scmp.eq.s32.totalorder %s23, 0
    %p218 = por %p216, %p217
    %s220 = sadd.s32 %s219, 1
    %p223 = scmp.eq.s32.totalorder %s17, 1
    %p224 = scmp.ne.s32.totalorder %s219, %s221
    %p225 = scmp.eq.s32.totalorder %s17, 0
    %p226 = por %p224, %p225
    %p227 = scmp.ne.s32.totalorder %s219, %s221
    %p228 = scmp.eq.s32.totalorder %s22, 1
    %p229 = por %p227, %p228
    %p230 = scmp.ne.s32.totalorder %s221, %s222
    %p231 = scmp.eq.s32.totalorder %s22, 0
    %p232 = por %p230, %p231
    %p233 = scmp.ne.s32.totalorder %s221, %s222
    %p234 = scmp.eq.s32.totalorder %s23, 1
    %p235 = por %p233, %p234
    %p237 = scmp.ne.s32.totalorder %s222, %s236
    %p238 = scmp.eq.s32.totalorder %s23, 0
    %p239 = por %p237, %p238
    %s241 = sadd.s32 %s240, 1
    %p244 = scmp.eq.s32.totalorder %s17, 1
    %p245 = scmp.ne.s32.totalorder %s240, %s242
    %p246 = scmp.eq.s32.totalorder %s17, 0
    %p247 = por %p245, %p246
    %p248 = scmp.ne.s32.totalorder %s240, %s242
    %p249 = scmp.eq.s32.totalorder %s22, 1
    %p250 = por %p248, %p249
    %p251 = scmp.ne.s32.totalorder %s242, %s243
    %p252 = scmp.eq.s32.totalorder %s22, 0
    %p253 = por %p251, %p252
    %p254 = scmp.ne.s32.totalorder %s242, %s243
    %p255 = scmp.eq.s32.totalorder %s23, 1
    %p256 = por %p254, %p255
    %p258 = scmp.ne.s32.totalorder %s243, %s257
    %p259 = scmp.eq.s32.totalorder %s23, 0
    %p260 = por %p258, %p259
    %s261 = ssub.s32 %s17, %s24
    %p262 = scmp.eq.s32.totalorder %s261, 0
    %s264 = sadd.s32 %s263, 1
    %s265 = scalar_select %p262, %s263, %s264
    %p268 = pneg %p262
    %p269 = scmp.eq.s32.totalorder %s17, 1
    %p270 = por %p268, %p269
    %p271 = scmp.ne.s32.totalorder %s263, %s266
    %p272 = scmp.eq.s32.totalorder %s17, 0
    %p273 = por %p271, %p272
    %p274 = scmp.ne.s32.totalorder %s263, %s266
    %p275 = scmp.eq.s32.totalorder %s22, 1
    %p276 = por %p274, %p275
    %p277 = scmp.ne.s32.totalorder %s266, %s267
    %p278 = scmp.eq.s32.totalorder %s22, 0
    %p279 = por %p277, %p278
    %p280 = scmp.ne.s32.totalorder %s266, %s267
    %p281 = scmp.eq.s32.totalorder %s23, 1
    %p282 = por %p280, %p281
    %p284 = scmp.ne.s32.totalorder %s267, %s283
    %p285 = scmp.eq.s32.totalorder %s23, 0
    %p286 = por %p284, %p285
    %p287 = scmp.le.s32.totalorder 1, %s17
    %p288 = scmp.lt.s32.totalorder %s17, 3
    %p289 = pnand %p287, %p288
    %p290 = pneg %p289
    // Predicated region
    $region9: #{_lambda_.1} parent=5 // pred_check
      _
    $region10: #{_lambda_.1} parent=5 // pred_check_branch
      %292 = sbr.rel (%p289) target = $region12
    $region11: #{_lambda_.1} parent=5 // pred_region
      %s293 = ssub.s32 %s17, 1
      // Predicated region
      $region13: #{_lambda_.1} parent=11 // pred_check
        %p294 = pneg %p64
      $region14: #{_lambda_.1} parent=11 // pred_check_branch
        %296 = sbr.rel (%p294) target = $region16
      $region15: #{_lambda_.1} parent=11 // pred_region
        _
      $region16: #{_lambda_.1} parent=11 // pred_fallthru
        _
      // Predicated region
      $region17: #{_lambda_.1} parent=11 // pred_check
        %p297 = pneg %p85
      $region18: #{_lambda_.1} parent=11 // pred_check_branch
        %299 = sbr.rel (%p297) target = $region20
      $region19: #{_lambda_.1} parent=11 // pred_region
        _
      $region20: #{_lambda_.1} parent=11 // pred_fallthru
        _
      // Predicated region
      $region21: #{_lambda_.1} parent=11 // pred_check
        %p300 = pneg %p106
      $region22: #{_lambda_.1} parent=11 // pred_check_branch
        %302 = sbr.rel (%p300) target = $region24
      $region23: #{_lambda_.1} parent=11 // pred_region
        _
      $region24: #{_lambda_.1} parent=11 // pred_fallthru
        _
      // Predicated region
      $region25: #{_lambda_.1} parent=11 // pred_check
        %p303 = pneg %p127
      $region26: #{_lambda_.1} parent=11 // pred_check_branch
        %305 = sbr.rel (%p303) target = $region28
      $region27: #{_lambda_.1} parent=11 // pred_region
        _
      $region28: #{_lambda_.1} parent=11 // pred_fallthru
        _
      // Predicated region
      $region29: #{_lambda_.1} parent=11 // pred_check
        %p306 = pneg %p148
      $region30: #{_lambda_.1} parent=11 // pred_check_branch
        %308 = sbr.rel (%p306) target = $region32
      $region31: #{_lambda_.1} parent=11 // pred_region
        _
      $region32: #{_lambda_.1} parent=11 // pred_fallthru
        _
      // Predicated region
      $region33: #{_lambda_.1} parent=11 // pred_check
        %p309 = pneg %p169
      $region34: #{_lambda_.1} parent=11 // pred_check_branch
        %311 = sbr.rel (%p309) target = $region36
      $region35: #{_lambda_.1} parent=11 // pred_region
        _
      $region36: #{_lambda_.1} parent=11 // pred_fallthru
        _
      // Predicated region
      $region37: #{_lambda_.1} parent=11 // pred_check
        %p312 = pneg %p190
      $region38: #{_lambda_.1} parent=11 // pred_check_branch
        %314 = sbr.rel (%p312) target = $region40
      $region39: #{_lambda_.1} parent=11 // pred_region
        _
      $region40: #{_lambda_.1} parent=11 // pred_fallthru
        _
      // Predicated region
      $region41: #{_lambda_.1} parent=11 // pred_check
        %p315 = pneg %p211
      $region42: #{_lambda_.1} parent=11 // pred_check_branch
        %317 = sbr.rel (%p315) target = $region44
      $region43: #{_lambda_.1} parent=11 // pred_region
        _
      $region44: #{_lambda_.1} parent=11 // pred_fallthru
        _
      // Predicated region
      $region45: #{_lambda_.1} parent=11 // pred_check
        %p318 = pneg %p232
      $region46: #{_lambda_.1} parent=11 // pred_check_branch
        %320 = sbr.rel (%p318) target = $region48
      $region47: #{_lambda_.1} parent=11 // pred_region
        _
      $region48: #{_lambda_.1} parent=11 // pred_fallthru
        _
      // Predicated region
      $region49: #{_lambda_.1} parent=11 // pred_check
        %p321 = pneg %p253
      $region50: #{_lambda_.1} parent=11 // pred_check_branch
        %323 = sbr.rel (%p321) target = $region52
      $region51: #{_lambda_.1} parent=11 // pred_region
        _
      $region52: #{_lambda_.1} parent=11 // pred_fallthru
        _
    $region12: #{_lambda_.1} parent=5 // pred_fallthru
      _
    %p324 = scmp.lt.s32.totalorder %s17, 2
    // Predicated region
    $region53: #{_lambda_.1} parent=5 // pred_check
      %p325 = pneg %p324
    $region54: #{_lambda_.1} parent=5 // pred_check_branch
      %327 = sbr.rel (%p325) target = $region56
    $region55: #{_lambda_.1} parent=5 // pred_region
      // Predicated region
      $region57: #{_lambda_.1} parent=55 // pred_check
        %p328 = pneg %p37
      $region58: #{_lambda_.1} parent=55 // pred_check_branch
        %330 = sbr.rel (%p328) target = $region60
      $region59: #{_lambda_.1} parent=55 // pred_region
        %p331 = scmp.lt.s32.totalorder %s17, 1
        %s332 = scalar_select %p331, %s17, 1
        %s333 = smul.addr %s332, 3
        %s334 = smul.addr %s333, 8
        %s335 = scalar_lea.vmem %s0, %s334
      $region60: #{_lambda_.1} parent=55 // pred_fallthru
        _
    $region56: #{_lambda_.1} parent=5 // pred_fallthru
      _
    %p336 = scmp.le.s32.totalorder 1, %s17
    %p337 = scmp.lt.s32.totalorder %s17, 3
    %p338 = pnand %p336, %p337
    %p339 = pneg %p338
    // Predicated region
    $region61: #{_lambda_.1} parent=5 // pred_check
      _
    $region62: #{_lambda_.1} parent=5 // pred_check_branch
      %341 = sbr.rel (%p338) target = $region64
    $region63: #{_lambda_.1} parent=5 // pred_region
      %s342 = ssub.s32 %s17, 1
      %p343 = scmp.lt.s32.totalorder %s22, 1
      %s344 = scalar_select %p343, %s22, 1
      %s345 = smul.addr %s344, 3
      %s346 = smul.addr %s345, 8
      %s347 = scalar_lea.vmem %s0, %s346
      %p348 = pneg %p43
      %p349 = pneg %p40
      %p350 = pneg %p64
      %p351 = pneg %p61
      %p352 = pneg %p85
      %p353 = pneg %p82
      %p354 = pneg %p106
      %p355 = pneg %p103
      %p356 = pneg %p127
      %p357 = pneg %p124
      %p358 = pneg %p148
      %p359 = pneg %p145
      %p360 = pneg %p169
      %p361 = pneg %p166
      %p362 = pneg %p190
      %p363 = pneg %p187
      %p364 = pneg %p211
      %p365 = pneg %p208
      %p366 = pneg %p232
      %p367 = pneg %p229
      %p368 = pneg %p253
      %p369 = pneg %p250
      %p370 = pneg %p279
      %p371 = pneg %p276
      %p372 = scmp.lt.s32.totalorder %s22, 1
      %s373 = scalar_select %p372, %s22, 1
      %s374 = smul.addr %s373, 3
      %s375 = smul.addr %s374, 8
      %s376 = scalar_lea.vmem %s11, %s375
      %p377 = scmp.lt.s32.totalorder %s22, 1
      %s378 = scalar_select %p377, %s22, 1
      %s379 = smul.addr %s378, 3
      %s380 = smul.addr %s379, 8
      %s381 = scalar_lea.vmem %s0, %s380
      %p382 = scmp.lt.s32.totalorder %s22, 1
      %s383 = scalar_select %p382, %s22, 1
      %s384 = smul.addr %s383, 3
      %s385 = smul.addr %s384, 8
      %s386 = scalar_lea.vmem %s11, %s385
      %v387 = vld [vmem:[%s1] sm:$0x7]
      %vm388 = vcmp.lt.s32.totalorder %v387, 16
      %v389 = vld [vmem:[%s381] sm:$0xff]
      %v390 = vld [vmem:[%s381 + $0x8] sm:$0xff]
      %v391 = vld [vmem:[%s381 + $0x10] sm:$0xff]
      %392 = vst [vmem:[#allocation2] sm:$0xff] %v389
      %393 = vst [vmem:[#allocation2 + $0x8] sm:$0xff] %v390
      %vm394 = vcmask 261120
      %395 = vst.msk [vmem:[#allocation2 + $0x10] sm:$0xff] %vm394, %v391
      %399 = vrot.lane.b32.xlu0 %v389, 127
      %v400 = vpop.permute.xlu0 %399
      %401 = vrot.lane.b32.xlu0 %v390, 127
      %v402 = vpop.permute.xlu0 %401
      %403 = vrot.lane.b32.xlu0 %v391, 127
      %v404 = vpop.permute.xlu0 %403
      %vm405 = vcmask 1039360
      %v406 = vsel %vm405, %v400, %v402
      %v407 = vsel %vm405, %v402, %v404
      %411 = vst [vmem:[#allocation2 + $0x18] sm:$0xff] %v406
      %412 = vst [vmem:[#allocation2 + $0x20] sm:$0xff] %v407
      %413 = vst.msk [vmem:[#allocation2 + $0x28] sm:$0xff] %vm394, %v404
      %414 = vrot.lane.b32.xlu0 %v389, 126
      %v415 = vpop.permute.xlu0 %414
      %416 = vrot.lane.b32.xlu0 %v390, 126
      %v417 = vpop.permute.xlu0 %416
      %418 = vrot.lane.b32.xlu0 %v391, 126
      %v419 = vpop.permute.xlu0 %418
      %vm420 = vcmask 1031168
      %v421 = vsel %vm420, %v415, %v417
      %v422 = vsel %vm420, %v417, %v419
      %426 = vst [vmem:[#allocation2 + $0x30] sm:$0xff] %v421
      %427 = vst [vmem:[#allocation2 + $0x38] sm:$0xff] %v422
      %428 = vst.msk [vmem:[#allocation2 + $0x40] sm:$0xff] %vm394, %v419
      %429 = vrot.lane.b32.xlu0 %v389, 110
      %v430 = vpop.permute.xlu0 %429
      %431 = vrot.lane.b32.xlu0 %v390, 110
      %v432 = vpop.permute.xlu0 %431
      %433 = vrot.lane.b32.xlu0 %v391, 110
      %v434 = vpop.permute.xlu0 %433
      %vm435 = vcmask 900096
      %v436 = vsel %vm435, %v430, %v432
      %v437 = vsel %vm435, %v432, %v434
      %441 = vst [vmem:[#allocation2 + $0x48] sm:$0xff] %v436
      %442 = vst [vmem:[#allocation2 + $0x50] sm:$0xff] %v437
      %443 = vst.msk [vmem:[#allocation2 + $0x58] sm:$0xff] %vm394, %v434
      %444 = vrot.lane.b32.xlu0 %v389, 109
      %v445 = vpop.permute.xlu0 %444
      %446 = vrot.lane.b32.xlu0 %v390, 109
      %v447 = vpop.permute.xlu0 %446
      %448 = vrot.lane.b32.xlu0 %v391, 109
      %v449 = vpop.permute.xlu0 %448
      %vm450 = vcmask 891904
      %v451 = vsel %vm450, %v445, %v447
      %v452 = vsel %vm450, %v447, %v449
      %456 = vst [vmem:[#allocation2 + $0x60] sm:$0xff] %v451
      %457 = vst [vmem:[#allocation2 + $0x68] sm:$0xff] %v452
      %458 = vst.msk [vmem:[#allocation2 + $0x70] sm:$0xff] %vm394, %v449
      %459 = vrot.lane.b32.xlu0 %v389, 108
      %v460 = vpop.permute.xlu0 %459
      %461 = vrot.lane.b32.xlu0 %v390, 108
      %v462 = vpop.permute.xlu0 %461
      %463 = vrot.lane.b32.xlu0 %v391, 108
      %v464 = vpop.permute.xlu0 %463
      %vm465 = vcmask 883712
      %v466 = vsel %vm465, %v460, %v462
      %v467 = vsel %vm465, %v462, %v464
      %471 = vst [vmem:[#allocation2 + $0x78] sm:$0xff] %v466
      %472 = vst [vmem:[#allocation2 + $0x80] sm:$0xff] %v467
      %473 = vst.msk [vmem:[#allocation2 + $0x88] sm:$0xff] %vm394, %v464
      %474 = vrot.lane.b32.xlu0 %v389, 92
      %v475 = vpop.permute.xlu0 %474
      %476 = vrot.lane.b32.xlu0 %v390, 92
      %v477 = vpop.permute.xlu0 %476
      %478 = vrot.lane.b32.xlu0 %v391, 92
      %v479 = vpop.permute.xlu0 %478
      %vm480 = vcmask 752640
      %v481 = vsel %vm480, %v475, %v477
      %v482 = vsel %vm480, %v477, %v479
      %486 = vst [vmem:[#allocation2 + $0x90] sm:$0xff] %v481
      %487 = vst [vmem:[#allocation2 + $0x98] sm:$0xff] %v482
      %488 = vst.msk [vmem:[#allocation2 + $0xa0] sm:$0xff] %vm394, %v479
      %489 = vrot.lane.b32.xlu0 %v389, 91
      %v490 = vpop.permute.xlu0 %489
      %491 = vrot.lane.b32.xlu0 %v390, 91
      %v492 = vpop.permute.xlu0 %491
      %493 = vrot.lane.b32.xlu0 %v391, 91
      %v494 = vpop.permute.xlu0 %493
      %vm495 = vcmask 744448
      %v496 = vsel %vm495, %v490, %v492
      %v497 = vsel %vm495, %v492, %v494
      %501 = vst [vmem:[#allocation2 + $0xa8] sm:$0xff] %v496
      %502 = vst [vmem:[#allocation2 + $0xb0] sm:$0xff] %v497
      %503 = vst.msk [vmem:[#allocation2 + $0xb8] sm:$0xff] %vm394, %v494
      %504 = vrot.lane.b32.xlu0 %v389, 90
      %v505 = vpop.permute.xlu0 %504
      %506 = vrot.lane.b32.xlu0 %v390, 90
      %v507 = vpop.permute.xlu0 %506
      %508 = vrot.lane.b32.xlu0 %v391, 90
      %v509 = vpop.permute.xlu0 %508
      %vm510 = vcmask 736256
      %v511 = vsel %vm510, %v505, %v507
      %v512 = vsel %vm510, %v507, %v509
      %516 = vst [vmem:[#allocation2 + $0xc0] sm:$0xff] %v511
      %517 = vst [vmem:[#allocation2 + $0xc8] sm:$0xff] %v512
      %518 = vst.msk [vmem:[#allocation2 + $0xd0] sm:$0xff] %vm394, %v509
      %v519 = vld [vmem:[%s2] sm:$0xff]
      %v520 = vld [vmem:[#allocation2] sm:$0xff]
      %v521 = vld [vmem:[#allocation2 + $0x8] sm:$0xff]
      %v522 = vld [vmem:[#allocation2 + $0x10] sm:$0xff]
      %v523 = vld [vmem:[#allocation2 + $0x18] sm:$0xff]
      %v524 = vld [vmem:[#allocation2 + $0x20] sm:$0xff]
      %v525 = vld [vmem:[#allocation2 + $0x28] sm:$0xff]
      %v526 = vld [vmem:[#allocation2 + $0x30] sm:$0xff]
      %v527 = vld [vmem:[#allocation2 + $0x38] sm:$0xff]
      %v528 = vld [vmem:[#allocation2 + $0x40] sm:$0xff]
      %v529 = vld [vmem:[#allocation2 + $0x48] sm:$0xff]
      %v530 = vld [vmem:[#allocation2 + $0x50] sm:$0xff]
      %v531 = vld [vmem:[#allocation2 + $0x58] sm:$0xff]
      %v532 = vld [vmem:[#allocation2 + $0x60] sm:$0xff]
      %v533 = vld [vmem:[#allocation2 + $0x68] sm:$0xff]
      %v534 = vld [vmem:[#allocation2 + $0x70] sm:$0xff]
      %v535 = vld [vmem:[#allocation2 + $0x78] sm:$0xff]
      %v536 = vld [vmem:[#allocation2 + $0x80] sm:$0xff]
      %v537 = vld [vmem:[#allocation2 + $0x88] sm:$0xff]
      %v538 = vld [vmem:[#allocation2 + $0x90] sm:$0xff]
      %v539 = vld [vmem:[#allocation2 + $0x98] sm:$0xff]
      %v540 = vld [vmem:[#allocation2 + $0xa0] sm:$0xff]
      %v541 = vld [vmem:[#allocation2 + $0xa8] sm:$0xff]
      %v542 = vld [vmem:[#allocation2 + $0xb0] sm:$0xff]
      %v543 = vld [vmem:[#allocation2 + $0xb8] sm:$0xff]
      %v544 = vld [vmem:[#allocation2 + $0xc0] sm:$0xff]
      %v545 = vld [vmem:[#allocation2 + $0xc8] sm:$0xff]
      %v546 = vld [vmem:[#allocation2 + $0xd0] sm:$0xff]
      %v547 = vld [vmem:[%s3] sm:$0xff]
      %549 = vset.pattern.permute.xlu0 0
      %550 = vperm.xlu0 %549, %v547
      %v551 = vpop.permute.xlu0 %550
      %vm553 = vcmask 588800
      %v555 = vsel %vm553, %v519, 0
      %557 = vmatprep.subr.mxu0 0.0
      %558 = vmatpush1.msra.mxu0 0.0
      %559 = vmatprep.subr.mxu0 0.0
      %560 = vmatpush1.msra.mxu0 0.0
      %561 = vmatprep.subr.mxu0 0.0
      %562 = vmatpush1.msra.mxu0 0.0
      %563 = vmatprep.subr.mxu0 0.0
      %564 = vmatpush1.msra.mxu0 0.0
      %565 = vmatprep.subr.mxu0 0.0
      %566 = vmatpush1.msra.mxu0 0.0
      %567 = vmatprep.subr.mxu0 0.0
      %568 = vmatpush1.msra.mxu0 0.0
      %569 = vmatprep.subr.mxu0 0.0
      %570 = vmatpush1.msra.mxu0 0.0
      %571 = vmatprep.subr.mxu0 %v545
      %572 = vmatpush1.msra.mxu0 %v544
      %573 = vmatprep.subr.mxu0 %v542
      %574 = vmatpush1.msra.mxu0 %v541
      %575 = vmatprep.subr.mxu0 %v539
      %576 = vmatpush1.msra.mxu0 %v538
      %577 = vmatprep.subr.mxu0 %v536
      %578 = vmatpush1.msra.mxu0 %v535
      %579 = vmatprep.subr.mxu0 %v533
      %580 = vmatpush1.msra.mxu0 %v532
      %581 = vmatprep.subr.mxu0 %v530
      %582 = vmatpush1.msra.mxu0 %v529
      %583 = vmatprep.subr.mxu0 %v527
      %584 = vmatpush1.msra.mxu0 %v526
      %585 = vmatprep.subr.mxu0 %v524
      %586 = vmatpush1.msra.mxu0 %v523
      %587 = vmatprep.subr.mxu0 %v521
      %588 = vmatpush1.msra.mxu0 %v520
      %589 = vmatprep.subr.mxu0 0.0
      %590 = vmatpush2.msra.mxu0 0.0
      %591 = vmatprep.subr.mxu0 0.0
      %592 = vmatpush2.msra.mxu0 0.0
      %593 = vmatprep.subr.mxu0 0.0
      %594 = vmatpush2.msra.mxu0 0.0
      %595 = vmatprep.subr.mxu0 0.0
      %596 = vmatpush2.msra.mxu0 0.0
      %597 = vmatprep.subr.mxu0 0.0
      %598 = vmatpush2.msra.mxu0 0.0
      %599 = vmatprep.subr.mxu0 0.0
      %600 = vmatpush2.msra.mxu0 0.0
      %601 = vmatprep.subr.mxu0 0.0
      %602 = vmatpush2.msra.mxu0 0.0
      %603 = vmatprep.subr.mxu0 0.0
      %604 = vmatpush2.msra.mxu0 0.0
      %605 = vmatprep.subr.mxu0 0.0
      %606 = vmatpush2.msra.mxu0 0.0
      %607 = vmatprep.subr.mxu0 0.0
      %608 = vmatpush2.msra.mxu0 0.0
      %609 = vmatprep.subr.mxu0 0.0
      %610 = vmatpush2.msra.mxu0 0.0
      %611 = vmatprep.subr.mxu0 0.0
      %612 = vmatpush2.msra.mxu0 0.0
      %613 = vmatprep.subr.mxu0 0.0
      %614 = vmatpush2.msra.mxu0 0.0
      %615 = vmatprep.subr.mxu0 0.0
      %616 = vmatpush2.msra.mxu0 0.0
      %617 = vmatprep.subr.mxu0 0.0
      %618 = vmatpush2.msra.mxu0 0.0
      %619 = vmatprep.subr.mxu0 0.0
      %620 = vmatpush2.msra.mxu0 0.0
      %621 = vmatprep.mubr.f32.mxu0 0.0
      %622 = vmatmul.mubr.f32.gmra.mxu0 %v555
      %v623 = vpop.f32.mrf.mxu0
      %v624 = vadd.f32 %v551, %v623
      %v625 = vpop.f32.mrf.mxu0
      %v626 = vadd.f32 %v551, %v625
      %627 = vdwg.mxu0
      %628 = vmatprep.subr.mxu0 0.0
      %629 = vmatpush1.msra.mxu0 0.0
      %630 = vmatprep.subr.mxu0 0.0
      %631 = vmatpush1.msra.mxu0 0.0
      %632 = vmatprep.subr.mxu0 0.0
      %633 = vmatpush1.msra.mxu0 0.0
      %634 = vmatprep.subr.mxu0 0.0
      %635 = vmatpush1.msra.mxu0 0.0
      %636 = vmatprep.subr.mxu0 0.0
      %637 = vmatpush1.msra.mxu0 0.0
      %638 = vmatprep.subr.mxu0 0.0
      %639 = vmatpush1.msra.mxu0 0.0
      %640 = vmatprep.subr.mxu0 0.0
      %641 = vmatpush1.msra.mxu0 0.0
      %642 = vmatprep.subr.mxu0 0.0
      %643 = vmatpush1.msra.mxu0 %v546
      %644 = vmatprep.subr.mxu0 0.0
      %645 = vmatpush1.msra.mxu0 %v543
      %646 = vmatprep.subr.mxu0 0.0
      %647 = vmatpush1.msra.mxu0 %v540
      %648 = vmatprep.subr.mxu0 0.0
      %649 = vmatpush1.msra.mxu0 %v537
      %650 = vmatprep.subr.mxu0 0.0
      %651 = vmatpush1.msra.mxu0 %v534
      %652 = vmatprep.subr.mxu0 0.0
      %653 = vmatpush1.msra.mxu0 %v531
      %654 = vmatprep.subr.mxu0 0.0
      %655 = vmatpush1.msra.mxu0 %v528
      %656 = vmatprep.subr.mxu0 0.0
      %657 = vmatpush1.msra.mxu0 %v525
      %658 = vmatprep.subr.mxu0 0.0
      %659 = vmatpush1.msra.mxu0 %v522
      %660 = vmatprep.subr.mxu0 0.0
      %661 = vmatpush2.msra.mxu0 0.0
      %662 = vmatprep.subr.mxu0 0.0
      %663 = vmatpush2.msra.mxu0 0.0
      %664 = vmatprep.subr.mxu0 0.0
      %665 = vmatpush2.msra.mxu0 0.0
      %666 = vmatprep.subr.mxu0 0.0
      %667 = vmatpush2.msra.mxu0 0.0
      %668 = vmatprep.subr.mxu0 0.0
      %669 = vmatpush2.msra.mxu0 0.0
      %670 = vmatprep.subr.mxu0 0.0
      %671 = vmatpush2.msra.mxu0 0.0
      %672 = vmatprep.subr.mxu0 0.0
      %673 = vmatpush2.msra.mxu0 0.0
      %674 = vmatprep.subr.mxu0 0.0
      %675 = vmatpush2.msra.mxu0 0.0
      %676 = vmatprep.subr.mxu0 0.0
      %677 = vmatpush2.msra.mxu0 0.0
      %678 = vmatprep.subr.mxu0 0.0
      %679 = vmatpush2.msra.mxu0 0.0
      %680 = vmatprep.subr.mxu0 0.0
      %681 = vmatpush2.msra.mxu0 0.0
      %682 = vmatprep.subr.mxu0 0.0
      %683 = vmatpush2.msra.mxu0 0.0
      %684 = vmatprep.subr.mxu0 0.0
      %685 = vmatpush2.msra.mxu0 0.0
      %686 = vmatprep.subr.mxu0 0.0
      %687 = vmatpush2.msra.mxu0 0.0
      %688 = vmatprep.subr.mxu0 0.0
      %689 = vmatpush2.msra.mxu0 0.0
      %690 = vmatprep.subr.mxu0 0.0
      %691 = vmatpush2.msra.mxu0 0.0
      %692 = vmatprep.mubr.f32.mxu0 0.0
      %693 = vmatmul.mubr.f32.gmra.mxu0 %v555
      %v694 = vpop.f32.mrf.mxu0
      %v695 = vadd.f32 %v551, %v694
      %v696 = vpop.f32.mrf.mxu0
      %697 = vdwg.mxu0
      %v698 = vxor.u32 %v624, 2147483648
      %v699 = vxor.u32 %v626, 2147483648
      %v700 = vxor.u32 %v695, 2147483648
      %v701 = vmul.f32 %v698, 1.442695
      %v702 = vpow.pop %v701
      %v703 = vmul.f32 %v699, 1.442695
      %v704 = vpow.pop %v703
      %v705 = vmul.f32 %v700, 1.442695
      %v706 = vpow.pop %v705
      %v707 = vadd.f32 %v702, 1.0
      %v708 = vadd.f32 %v704, 1.0
      %v709 = vadd.f32 %v706, 1.0
      %v710 = vrcp.pop %v707
      %v711 = vmul.f32 1.0, %v710
      %v712 = vrcp.pop %v708
      %v713 = vmul.f32 1.0, %v712
      %v714 = vrcp.pop %v709
      %v715 = vmul.f32 1.0, %v714
      %v716 = vmul.f32 %v624, %v711
      %v717 = vmul.f32 %v626, %v713
      %v718 = vmul.f32 %v695, %v715
      %v719 = vsel %vm388, 1, 0
      %v720 = vlaneseq
      %v721 = vshrl.u32 %v720, 7
      %v722 = vsub.s32 0, %v721
      %v723 = vrot.slane %v719, %v722
      %v724 = vlaneseq
      %v725 = vshrl.u32 %v724, 7
      %v726 = vsub.s32 1, %v725
      %v727 = vrot.slane %v719, %v726
      %v728 = vlaneseq
      %v729 = vshrl.u32 %v728, 7
      %v730 = vsub.s32 2, %v729
      %v731 = vrot.slane %v719, %v730
      %vm732 = vcmp.eq.s32.totalorder %v723, 1
      %vm733 = vcmp.eq.s32.totalorder %v727, 1
      %vm734 = vcmp.eq.s32.totalorder %v731, 1
      %v735 = vsel %vm732, %v716, 0.0
      %v736 = vsel %vm733, %v717, 0.0
      %v737 = vsel %vm734, %v718, 0.0
      %v739 = vsel %vm394, %v737, 0
      %741 = vmatprep.subr.mxu0 0.0
      %742 = vmatpush1.msra.mxu0 1.0
      %743 = vmatprep.subr.mxu0 0.0
      %744 = vmatpush1.msra.mxu0 1.0
      %745 = vmatprep.subr.mxu0 0.0
      %746 = vmatpush1.msra.mxu0 1.0
      %747 = vmatprep.subr.mxu0 0.0
      %748 = vmatpush1.msra.mxu0 1.0
      %749 = vmatprep.subr.mxu0 0.0
      %750 = vmatpush1.msra.mxu0 1.0
      %751 = vmatprep.subr.mxu0 0.0
      %752 = vmatpush1.msra.mxu0 1.0
      %753 = vmatprep.subr.mxu0 0.0
      %754 = vmatpush1.msra.mxu0 1.0
      %755 = vmatprep.subr.mxu0 0.0
      %756 = vmatpush1.msra.mxu0 1.0
      %757 = vmatprep.subr.mxu0 0.0
      %758 = vmatpush1.msra.mxu0 1.0
      %759 = vmatprep.subr.mxu0 0.0
      %760 = vmatpush1.msra.mxu0 1.0
      %761 = vmatprep.subr.mxu0 0.0
      %762 = vmatpush1.msra.mxu0 1.0
      %763 = vmatprep.subr.mxu0 0.0
      %764 = vmatpush1.msra.mxu0 1.0
      %765 = vmatprep.subr.mxu0 0.0
      %766 = vmatpush1.msra.mxu0 1.0
      %767 = vmatprep.subr.mxu0 0.0
      %768 = vmatpush1.msra.mxu0 1.0
      %769 = vmatprep.subr.mxu0 0.0
      %770 = vmatpush1.msra.mxu0 1.0
      %771 = vmatprep.subr.mxu0 0.0
      %772 = vmatpush1.msra.mxu0 1.0
      %773 = vmatprep.subr.mxu0 0.0
      %774 = vmatpush2.msra.mxu0 1.0
      %775 = vmatprep.subr.mxu0 0.0
      %776 = vmatpush2.msra.mxu0 1.0
      %777 = vmatprep.subr.mxu0 0.0
      %778 = vmatpush2.msra.mxu0 1.0
      %779 = vmatprep.subr.mxu0 0.0
      %780 = vmatpush2.msra.mxu0 1.0
      %781 = vmatprep.subr.mxu0 0.0
      %782 = vmatpush2.msra.mxu0 1.0
      %783 = vmatprep.subr.mxu0 0.0
      %784 = vmatpush2.msra.mxu0 1.0
      %785 = vmatprep.subr.mxu0 0.0
      %786 = vmatpush2.msra.mxu0 1.0
      %787 = vmatprep.subr.mxu0 0.0
      %788 = vmatpush2.msra.mxu0 1.0
      %789 = vmatprep.subr.mxu0 0.0
      %790 = vmatpush2.msra.mxu0 1.0
      %791 = vmatprep.subr.mxu0 0.0
      %792 = vmatpush2.msra.mxu0 1.0
      %793 = vmatprep.subr.mxu0 0.0
      %794 = vmatpush2.msra.mxu0 1.0
      %795 = vmatprep.subr.mxu0 0.0
      %796 = vmatpush2.msra.mxu0 1.0
      %797 = vmatprep.subr.mxu0 0.0
      %798 = vmatpush2.msra.mxu0 1.0
      %799 = vmatprep.subr.mxu0 0.0
      %800 = vmatpush2.msra.mxu0 1.0
      %801 = vmatprep.subr.mxu0 0.0
      %802 = vmatpush2.msra.mxu0 1.0
      %803 = vmatprep.subr.mxu0 0.0
      %804 = vmatpush2.msra.mxu0 1.0
      %805 = vmatprep.mubr.f32.mxu0 %v736
      %806 = vmatmul.mubr.f32.gmra.mxu0 %v735
      %v807 = vpop.f32.mrf.mxu0
      %v808 = vadd.f32 0.0, %v807
      %v809 = vpop.f32.mrf.mxu0
      %810 = vdwg.mxu0
      %811 = vmatprep.subr.mxu0 0.0
      %812 = vmatpush1.msra.mxu0 0.0
      %813 = vmatprep.subr.mxu0 0.0
      %814 = vmatpush1.msra.mxu0 0.0
      %815 = vmatprep.subr.mxu0 0.0
      %816 = vmatpush1.msra.mxu0 0.0
      %817 = vmatprep.subr.mxu0 0.0
      %818 = vmatpush1.msra.mxu0 0.0
      %819 = vmatprep.subr.mxu0 0.0
      %820 = vmatpush1.msra.mxu0 0.0
      %821 = vmatprep.subr.mxu0 0.0
      %822 = vmatpush1.msra.mxu0 0.0
      %823 = vmatprep.subr.mxu0 0.0
      %824 = vmatpush1.msra.mxu0 0.0
      %825 = vmatprep.subr.mxu0 0.0
      %826 = vmatpush1.msra.mxu0 0.0
      %827 = vmatprep.subr.mxu0 0.0
      %828 = vmatpush1.msra.mxu0 0.0
      %829 = vmatprep.subr.mxu0 0.0
      %830 = vmatpush1.msra.mxu0 0.0
      %831 = vmatprep.subr.mxu0 0.0
      %832 = vmatpush1.msra.mxu0 0.0
      %833 = vmatprep.subr.mxu0 0.0
      %834 = vmatpush1.msra.mxu0 0.0
      %835 = vmatprep.subr.mxu0 0.0
      %836 = vmatpush1.msra.mxu0 1.0
      %837 = vmatprep.subr.mxu0 0.0
      %838 = vmatpush1.msra.mxu0 1.0
      %839 = vmatprep.subr.mxu0 0.0
      %840 = vmatpush1.msra.mxu0 1.0
      %841 = vmatprep.subr.mxu0 0.0
      %842 = vmatpush1.msra.mxu0 1.0
      %843 = vmatprep.subr.mxu0 0.0
      %844 = vmatpush2.msra.mxu0 0.0
      %845 = vmatprep.subr.mxu0 0.0
      %846 = vmatpush2.msra.mxu0 0.0
      %847 = vmatprep.subr.mxu0 0.0
      %848 = vmatpush2.msra.mxu0 0.0
      %849 = vmatprep.subr.mxu0 0.0
      %850 = vmatpush2.msra.mxu0 0.0
      %851 = vmatprep.subr.mxu0 0.0
      %852 = vmatpush2.msra.mxu0 0.0
      %853 = vmatprep.subr.mxu0 0.0
      %854 = vmatpush2.msra.mxu0 0.0
      %855 = vmatprep.subr.mxu0 0.0
      %856 = vmatpush2.msra.mxu0 0.0
      %857 = vmatprep.subr.mxu0 0.0
      %858 = vmatpush2.msra.mxu0 0.0
      %859 = vmatprep.subr.mxu0 0.0
      %860 = vmatpush2.msra.mxu0 0.0
      %861 = vmatprep.subr.mxu0 0.0
      %862 = vmatpush2.msra.mxu0 0.0
      %863 = vmatprep.subr.mxu0 0.0
      %864 = vmatpush2.msra.mxu0 0.0
      %865 = vmatprep.subr.mxu0 0.0
      %866 = vmatpush2.msra.mxu0 0.0
      %867 = vmatprep.subr.mxu0 0.0
      %868 = vmatpush2.msra.mxu0 0.0
      %869 = vmatprep.subr.mxu0 0.0
      %870 = vmatpush2.msra.mxu0 0.0
      %871 = vmatprep.subr.mxu0 0.0
      %872 = vmatpush2.msra.mxu0 0.0
      %873 = vmatprep.subr.mxu0 0.0
      %874 = vmatpush2.msra.mxu0 0.0
      %875 = vmatprep.mubr.f32.mxu0 0.0
      %876 = vmatmul.mubr.f32.gmra.mxu0 %v739
      %v877 = vpop.f32.mrf.mxu0
      %v878 = vadd.f32 %v808, %v877
      %v879 = vpop.f32.mrf.mxu0
      %880 = vdwg.mxu0
      %v881 = vmul.f32 %v735, %v735
      %v882 = vmul.f32 %v736, %v736
      %v883 = vmul.f32 %v737, %v737
      %v885 = vsel %vm394, %v883, 0
      %887 = vmatprep.subr.mxu0 0.0
      %888 = vmatpush1.msra.mxu0 1.0
      %889 = vmatprep.subr.mxu0 0.0
      %890 = vmatpush1.msra.mxu0 1.0
      %891 = vmatprep.subr.mxu0 0.0
      %892 = vmatpush1.msra.mxu0 1.0
      %893 = vmatprep.subr.mxu0 0.0
      %894 = vmatpush1.msra.mxu0 1.0
      %895 = vmatprep.subr.mxu0 0.0
      %896 = vmatpush1.msra.mxu0 1.0
      %897 = vmatprep.subr.mxu0 0.0
      %898 = vmatpush1.msra.mxu0 1.0
      %899 = vmatprep.subr.mxu0 0.0
      %900 = vmatpush1.msra.mxu0 1.0
      %901 = vmatprep.subr.mxu0 0.0
      %902 = vmatpush1.msra.mxu0 1.0
      %903 = vmatprep.subr.mxu0 0.0
      %904 = vmatpush1.msra.mxu0 1.0
      %905 = vmatprep.subr.mxu0 0.0
      %906 = vmatpush1.msra.mxu0 1.0
      %907 = vmatprep.subr.mxu0 0.0
      %908 = vmatpush1.msra.mxu0 1.0
      %909 = vmatprep.subr.mxu0 0.0
      %910 = vmatpush1.msra.mxu0 1.0
      %911 = vmatprep.subr.mxu0 0.0
      %912 = vmatpush1.msra.mxu0 1.0
      %913 = vmatprep.subr.mxu0 0.0
      %914 = vmatpush1.msra.mxu0 1.0
      %915 = vmatprep.subr.mxu0 0.0
      %916 = vmatpush1.msra.mxu0 1.0
      %917 = vmatprep.subr.mxu0 0.0
      %918 = vmatpush1.msra.mxu0 1.0
      %919 = vmatprep.subr.mxu0 0.0
      %920 = vmatpush2.msra.mxu0 1.0
      %921 = vmatprep.subr.mxu0 0.0
      %922 = vmatpush2.msra.mxu0 1.0
      %923 = vmatprep.subr.mxu0 0.0
      %924 = vmatpush2.msra.mxu0 1.0
      %925 = vmatprep.subr.mxu0 0.0
      %926 = vmatpush2.msra.mxu0 1.0
      %927 = vmatprep.subr.mxu0 0.0
      %928 = vmatpush2.msra.mxu0 1.0
      %929 = vmatprep.subr.mxu0 0.0
      %930 = vmatpush2.msra.mxu0 1.0
      %931 = vmatprep.subr.mxu0 0.0
      %932 = vmatpush2.msra.mxu0 1.0
      %933 = vmatprep.subr.mxu0 0.0
      %934 = vmatpush2.msra.mxu0 1.0
      %935 = vmatprep.subr.mxu0 0.0
      %936 = vmatpush2.msra.mxu0 1.0
      %937 = vmatprep.subr.mxu0 0.0
      %938 = vmatpush2.msra.mxu0 1.0
      %939 = vmatprep.subr.mxu0 0.0
      %940 = vmatpush2.msra.mxu0 1.0
      %941 = vmatprep.subr.mxu0 0.0
      %942 = vmatpush2.msra.mxu0 1.0
      %943 = vmatprep.subr.mxu0 0.0
      %944 = vmatpush2.msra.mxu0 1.0
      %945 = vmatprep.subr.mxu0 0.0
      %946 = vmatpush2.msra.mxu0 1.0
      %947 = vmatprep.subr.mxu0 0.0
      %948 = vmatpush2.msra.mxu0 1.0
      %949 = vmatprep.subr.mxu0 0.0
      %950 = vmatpush2.msra.mxu0 1.0
      %951 = vmatprep.mubr.f32.mxu0 %v882
      %952 = vmatmul.mubr.f32.gmra.mxu0 %v881
      %v953 = vpop.f32.mrf.mxu0
      %v954 = vadd.f32 0.0, %v953
      %v955 = vpop.f32.mrf.mxu0
      %956 = vdwg.mxu0
      %957 = vmatprep.subr.mxu0 0.0
      %958 = vmatpush1.msra.mxu0 0.0
      %959 = vmatprep.subr.mxu0 0.0
      %960 = vmatpush1.msra.mxu0 0.0
      %961 = vmatprep.subr.mxu0 0.0
      %962 = vmatpush1.msra.mxu0 0.0
      %963 = vmatprep.subr.mxu0 0.0
      %964 = vmatpush1.msra.mxu0 0.0
      %965 = vmatprep.subr.mxu0 0.0
      %966 = vmatpush1.msra.mxu0 0.0
      %967 = vmatprep.subr.mxu0 0.0
      %968 = vmatpush1.msra.mxu0 0.0
      %969 = vmatprep.subr.mxu0 0.0
      %970 = vmatpush1.msra.mxu0 0.0
      %971 = vmatprep.subr.mxu0 0.0
      %972 = vmatpush1.msra.mxu0 0.0
      %973 = vmatprep.subr.mxu0 0.0
      %974 = vmatpush1.msra.mxu0 0.0
      %975 = vmatprep.subr.mxu0 0.0
      %976 = vmatpush1.msra.mxu0 0.0
      %977 = vmatprep.subr.mxu0 0.0
      %978 = vmatpush1.msra.mxu0 0.0
      %979 = vmatprep.subr.mxu0 0.0
      %980 = vmatpush1.msra.mxu0 0.0
      %981 = vmatprep.subr.mxu0 0.0
      %982 = vmatpush1.msra.mxu0 1.0
      %983 = vmatprep.subr.mxu0 0.0
      %984 = vmatpush1.msra.mxu0 1.0
      %985 = vmatprep.subr.mxu0 0.0
      %986 = vmatpush1.msra.mxu0 1.0
      %987 = vmatprep.subr.mxu0 0.0
      %988 = vmatpush1.msra.mxu0 1.0
      %989 = vmatprep.subr.mxu0 0.0
      %990 = vmatpush2.msra.mxu0 0.0
      %991 = vmatprep.subr.mxu0 0.0
      %992 = vmatpush2.msra.mxu0 0.0
      %993 = vmatprep.subr.mxu0 0.0
      %994 = vmatpush2.msra.mxu0 0.0
      %995 = vmatprep.subr.mxu0 0.0
      %996 = vmatpush2.msra.mxu0 0.0
      %997 = vmatprep.subr.mxu0 0.0
      %998 = vmatpush2.msra.mxu0 0.0
      %999 = vmatprep.subr.mxu0 0.0
      %1000 = vmatpush2.msra.mxu0 0.0
      %1001 = vmatprep.subr.mxu0 0.0
      %1002 = vmatpush2.msra.mxu0 0.0
      %1003 = vmatprep.subr.mxu0 0.0
      %1004 = vmatpush2.msra.mxu0 0.0
      %1005 = vmatprep.subr.mxu0 0.0
      %1006 = vmatpush2.msra.mxu0 0.0
      %1007 = vmatprep.subr.mxu0 0.0
      %1008 = vmatpush2.msra.mxu0 0.0
      %1009 = vmatprep.subr.mxu0 0.0
      %1010 = vmatpush2.msra.mxu0 0.0
      %1011 = vmatprep.subr.mxu0 0.0
      %1012 = vmatpush2.msra.mxu0 0.0
      %1013 = vmatprep.subr.mxu0 0.0
      %1014 = vmatpush2.msra.mxu0 0.0
      %1015 = vmatprep.subr.mxu0 0.0
      %1016 = vmatpush2.msra.mxu0 0.0
      %1017 = vmatprep.subr.mxu0 0.0
      %1018 = vmatpush2.msra.mxu0 0.0
      %1019 = vmatprep.subr.mxu0 0.0
      %1020 = vmatpush2.msra.mxu0 0.0
      %1021 = vmatprep.mubr.f32.mxu0 0.0
      %1022 = vmatmul.mubr.f32.gmra.mxu0 %v885
      %v1023 = vpop.f32.mrf.mxu0
      %v1024 = vadd.f32 %v954, %v1023
      %v1025 = vpop.f32.mrf.mxu0
      %1026 = vdwg.mxu0
      %v1027 = vld [vmem:[%s10] sm:$0xff]
      %vm1028 = vcmask 64512
      %v1030 = vsel %vm1028, %v1027, 0
      %1032 = vmatprep.subr.mxu0 0.0
      %1033 = vmatpush1.msra.mxu0 0.0
      %1034 = vmatprep.subr.mxu0 0.0
      %1035 = vmatpush1.msra.mxu0 0.0
      %1036 = vmatprep.subr.mxu0 0.0
      %1037 = vmatpush1.msra.mxu0 0.0
      %1038 = vmatprep.subr.mxu0 0.0
      %1039 = vmatpush1.msra.mxu0 0.0
      %1040 = vmatprep.subr.mxu0 0.0
      %1041 = vmatpush1.msra.mxu0 0.0
      %1042 = vmatprep.subr.mxu0 0.0
      %1043 = vmatpush1.msra.mxu0 0.0
      %1044 = vmatprep.subr.mxu0 0.0
      %1045 = vmatpush1.msra.mxu0 0.0
      %1046 = vmatprep.subr.mxu0 0.0
      %1047 = vmatpush1.msra.mxu0 0.0
      %1048 = vmatprep.subr.mxu0 0.0
      %1049 = vmatpush1.msra.mxu0 0.0
      %1050 = vmatprep.subr.mxu0 0.0
      %1051 = vmatpush1.msra.mxu0 0.0
      %1052 = vmatprep.subr.mxu0 0.0
      %1053 = vmatpush1.msra.mxu0 0.0
      %1054 = vmatprep.subr.mxu0 0.0
      %1055 = vmatpush1.msra.mxu0 0.0
      %1056 = vmatprep.subr.mxu0 0.0
      %1057 = vmatpush1.msra.mxu0 0.0
      %1058 = vmatprep.subr.mxu0 0.0
      %1059 = vmatpush1.msra.mxu0 0.0
      %1060 = vmatprep.subr.mxu0 0.0
      %1061 = vmatpush1.msra.mxu0 0.0
      %1062 = vmatprep.subr.mxu0 0.0
      %1063 = vmatpush1.msra.mxu0 %v878
      %1064 = vmatprep.subr.mxu0 0.0
      %1065 = vmatpush2.msra.mxu0 0.0
      %1066 = vmatprep.subr.mxu0 0.0
      %1067 = vmatpush2.msra.mxu0 0.0
      %1068 = vmatprep.subr.mxu0 0.0
      %1069 = vmatpush2.msra.mxu0 0.0
      %1070 = vmatprep.subr.mxu0 0.0
      %1071 = vmatpush2.msra.mxu0 0.0
      %1072 = vmatprep.subr.mxu0 0.0
      %1073 = vmatpush2.msra.mxu0 0.0
      %1074 = vmatprep.subr.mxu0 0.0
      %1075 = vmatpush2.msra.mxu0 0.0
      %1076 = vmatprep.subr.mxu0 0.0
      %1077 = vmatpush2.msra.mxu0 0.0
      %1078 = vmatprep.subr.mxu0 0.0
      %1079 = vmatpush2.msra.mxu0 0.0
      %1080 = vmatprep.subr.mxu0 0.0
      %1081 = vmatpush2.msra.mxu0 0.0
      %1082 = vmatprep.subr.mxu0 0.0
      %1083 = vmatpush2.msra.mxu0 0.0
      %1084 = vmatprep.subr.mxu0 0.0
      %1085 = vmatpush2.msra.mxu0 0.0
      %1086 = vmatprep.subr.mxu0 0.0
      %1087 = vmatpush2.msra.mxu0 0.0
      %1088 = vmatprep.subr.mxu0 0.0
      %1089 = vmatpush2.msra.mxu0 0.0
      %1090 = vmatprep.subr.mxu0 0.0
      %1091 = vmatpush2.msra.mxu0 0.0
      %1092 = vmatprep.subr.mxu0 0.0
      %1093 = vmatpush2.msra.mxu0 0.0
      %1094 = vmatprep.subr.mxu0 0.0
      %1095 = vmatpush2.msra.mxu0 0.0
      %1096 = vmatprep.mubr.f32.mxu0 0.0
      %1097 = vmatmul.mubr.f32.gmra.mxu0 %v1030
      %v1098 = vpop.f32.mrf.mxu0
      %v1099 = vadd.f32 0.0, %v1098
      %v1100 = vpop.f32.mrf.mxu0
      %1101 = vdwg.mxu0
      %1102 = vmatprep.subr.mxu0 0.0
      %1103 = vmatpush1.msra.mxu0 0.0
      %1104 = vmatprep.subr.mxu0 0.0
      %1105 = vmatpush1.msra.mxu0 0.0
      %1106 = vmatprep.subr.mxu0 0.0
      %1107 = vmatpush1.msra.mxu0 0.0
      %1108 = vmatprep.subr.mxu0 0.0
      %1109 = vmatpush1.msra.mxu0 0.0
      %1110 = vmatprep.subr.mxu0 0.0
      %1111 = vmatpush1.msra.mxu0 0.0
      %1112 = vmatprep.subr.mxu0 0.0
      %1113 = vmatpush1.msra.mxu0 0.0
      %1114 = vmatprep.subr.mxu0 0.0
      %1115 = vmatpush1.msra.mxu0 0.0
      %1116 = vmatprep.subr.mxu0 0.0
      %1117 = vmatpush1.msra.mxu0 0.0
      %1118 = vmatprep.subr.mxu0 0.0
      %1119 = vmatpush1.msra.mxu0 0.0
      %1120 = vmatprep.subr.mxu0 0.0
      %1121 = vmatpush1.msra.mxu0 0.0
      %1122 = vmatprep.subr.mxu0 0.0
      %1123 = vmatpush1.msra.mxu0 0.0
      %1124 = vmatprep.subr.mxu0 0.0
      %1125 = vmatpush1.msra.mxu0 0.0
      %1126 = vmatprep.subr.mxu0 0.0
      %1127 = vmatpush1.msra.mxu0 0.0
      %1128 = vmatprep.subr.mxu0 0.0
      %1129 = vmatpush1.msra.mxu0 0.0
      %1130 = vmatprep.subr.mxu0 0.0
      %1131 = vmatpush1.msra.mxu0 0.0
      %1132 = vmatprep.subr.mxu0 0.0
      %1133 = vmatpush1.msra.mxu0 %v1024
      %1134 = vmatprep.subr.mxu0 0.0
      %1135 = vmatpush2.msra.mxu0 0.0
      %1136 = vmatprep.subr.mxu0 0.0
      %1137 = vmatpush2.msra.mxu0 0.0
      %1138 = vmatprep.subr.mxu0 0.0
      %1139 = vmatpush2.msra.mxu0 0.0
      %1140 = vmatprep.subr.mxu0 0.0
      %1141 = vmatpush2.msra.mxu0 0.0
      %1142 = vmatprep.subr.mxu0 0.0
      %1143 = vmatpush2.msra.mxu0 0.0
      %1144 = vmatprep.subr.mxu0 0.0
      %1145 = vmatpush2.msra.mxu0 0.0
      %1146 = vmatprep.subr.mxu0 0.0
      %1147 = vmatpush2.msra.mxu0 0.0
      %1148 = vmatprep.subr.mxu0 0.0
      %1149 = vmatpush2.msra.mxu0 0.0
      %1150 = vmatprep.subr.mxu0 0.0
      %1151 = vmatpush2.msra.mxu0 0.0
      %1152 = vmatprep.subr.mxu0 0.0
      %1153 = vmatpush2.msra.mxu0 0.0
      %1154 = vmatprep.subr.mxu0 0.0
      %1155 = vmatpush2.msra.mxu0 0.0
      %1156 = vmatprep.subr.mxu0 0.0
      %1157 = vmatpush2.msra.mxu0 0.0
      %1158 = vmatprep.subr.mxu0 0.0
      %1159 = vmatpush2.msra.mxu0 0.0
      %1160 = vmatprep.subr.mxu0 0.0
      %1161 = vmatpush2.msra.mxu0 0.0
      %1162 = vmatprep.subr.mxu0 0.0
      %1163 = vmatpush2.msra.mxu0 0.0
      %1164 = vmatprep.subr.mxu0 0.0
      %1165 = vmatpush2.msra.mxu0 0.0
      %1166 = vmatprep.mubr.f32.mxu0 0.0
      %1167 = vmatmul.mubr.f32.gmra.mxu0 %v1030
      %v1168 = vpop.f32.mrf.mxu0
      %v1169 = vadd.f32 0.0, %v1168
      %v1170 = vpop.f32.mrf.mxu0
      %1171 = vdwg.mxu0
      %v1172 = vmul.f32 %v1099, %v1099
      %v1173 = vsub.f32 %v1169, %v1172
      %v1174 = vmax.f32 %v1173, 0.0
      %v1175 = vadd.f32 %v1174, 1e-05
      %v1176 = vrsqrt.pop %v1175
      %v1177 = vld [vmem:[%s4] sm:$0xff]
      %v1178 = vmul.f32 %v1176, %v1177
      %v1179 = vld [vmem:[%s5] sm:$0xff]
      %v1180 = vmul.f32 %v1099, %v1178
      %v1181 = vsub.f32 %v1179, %v1180
      %1183 = vset.pattern.permute.xlu0 0
      %1184 = vperm.xlu0 %1183, %v1178
      %v1185 = vpop.permute.xlu0 %1184
      %v1187 = vmul.f32 %v735, %v1185
      %v1188 = vmul.f32 %v736, %v1185
      %v1189 = vmul.f32 %v737, %v1185
      %1191 = vset.pattern.permute.xlu0 0
      %1192 = vperm.xlu0 %1191, %v1181
      %v1193 = vpop.permute.xlu0 %1192
      %v1195 = vadd.f32 %v1187, %v1193
      %v1196 = vadd.f32 %v1188, %v1193
      %v1197 = vadd.f32 %v1189, %v1193
      %1198 = vst [vmem:[#allocation4] sm:$0xff] 0.0
      %1199 = vst [vmem:[#allocation4 + $0x8] sm:$0xff] 0.0
      %vm1200 = vcmask 326656
      %1201 = vst.msk [vmem:[#allocation4 + $0x10] sm:$0xff] %vm1200, 0.0
      %1205 = vrot.lane.b32.xlu0 %v1195, 3
      %v1206 = vpop.permute.xlu0 %1205
      %1207 = vrot.lane.b32.xlu0 %v1196, 3
      %v1208 = vpop.permute.xlu0 %1207
      %1209 = vrot.lane.b32.xlu0 %v1197, 3
      %v1210 = vpop.permute.xlu0 %1209
      %vm1211 = vcmask 23552
      %v1212 = vsel %vm1211, %v1206, %v1208
      %v1213 = vsel %vm1211, %v1208, %v1210
      %vm1217 = vcmask 1047576
      %1218 = vst.msk [vmem:[#allocation4] sm:$0xff] %vm1217, %v1206
      %1219 = vst [vmem:[#allocation4 + $0x8] sm:$0xff] %v1212
      %vm1220 = vcmask 285696
      %1221 = vst.msk [vmem:[#allocation4 + $0x10] sm:$0xff] %vm1220, %v1213
      %v1222 = vld [vmem:[#allocation4] sm:$0xff]
      %v1223 = vld [vmem:[#allocation4 + $0x8] sm:$0xff]
      %v1224 = vld [vmem:[#allocation4 + $0x10] sm:$0xff]
      %vm1225 = vcmp.eq.s32.totalorder %v387, 0
      %vm1226 = vcmp.eq.s32.totalorder %v387, 17
      %v1227 = vsel %vm1226, 1, 0
      %v1228 = vlaneseq
      %v1229 = vshrl.u32 %v1228, 7
      %v1230 = vsub.s32 0, %v1229
      %v1231 = vrot.slane %v1227, %v1230
      %v1232 = vlaneseq
      %v1233 = vshrl.u32 %v1232, 7
      %v1234 = vsub.s32 1, %v1233
      %v1235 = vrot.slane %v1227, %v1234
      %v1236 = vlaneseq
      %v1237 = vshrl.u32 %v1236, 7
      %v1238 = vsub.s32 2, %v1237
      %v1239 = vrot.slane %v1227, %v1238
      %vm1240 = vcmp.eq.s32.totalorder %v1231, 1
      %vm1241 = vcmp.eq.s32.totalorder %v1235, 1
      %vm1242 = vcmp.eq.s32.totalorder %v1239, 1
      %1246 = vrot.lane.b32.xlu0 %v1222, 126
      %v1247 = vpop.permute.xlu0 %1246
      %1248 = vrot.lane.b32.xlu0 %v1223, 126
      %v1249 = vpop.permute.xlu0 %1248
      %1250 = vrot.lane.b32.xlu0 %v1224, 126
      %v1251 = vpop.permute.xlu0 %1250
      %v1252 = vsel %vm420, %v1247, %v1249
      %v1253 = vsel %vm420, %v1249, %v1251
      %v1257 = vsel %vm1240, %v1222, %v1252
      %v1258 = vsel %vm1241, %v1223, %v1253
      %v1259 = vsel %vm1242, %v1224, %v1251
      %v1260 = vsel %vm1225, 1, 0
      %v1261 = vlaneseq
      %v1262 = vshrl.u32 %v1261, 7
      %v1263 = vsub.s32 0, %v1262
      %v1264 = vrot.slane %v1260, %v1263
      %v1265 = vlaneseq
      %v1266 = vshrl.u32 %v1265, 7
      %v1267 = vsub.s32 1, %v1266
      %v1268 = vrot.slane %v1260, %v1267
      %v1269 = vlaneseq
      %v1270 = vshrl.u32 %v1269, 7
      %v1271 = vsub.s32 2, %v1270
      %v1272 = vrot.slane %v1260, %v1271
      %vm1273 = vcmp.eq.s32.totalorder %v1264, 1
      %vm1274 = vcmp.eq.s32.totalorder %v1268, 1
      %vm1275 = vcmp.eq.s32.totalorder %v1272, 1
      %1276 = vrot.lane.b32.xlu0 %v1222, 124
      %v1277 = vpop.permute.xlu0 %1276
      %1278 = vrot.lane.b32.xlu0 %v1223, 124
      %v1279 = vpop.permute.xlu0 %1278
      %1280 = vrot.lane.b32.xlu0 %v1224, 124
      %v1281 = vpop.permute.xlu0 %1280
      %vm1282 = vcmask 1014784
      %v1283 = vsel %vm1282, %v1277, %v1279
      %v1284 = vsel %vm1282, %v1279, %v1281
      %v1288 = vsel %vm1273, %v1283, %v1257
      %v1289 = vsel %vm1274, %v1284, %v1258
      %v1290 = vsel %vm1275, %v1281, %v1259
      %1292 = vrot.lane.b32.xlu0 %v1288, 110
      %v1293 = vpop.permute.xlu0 %1292
      %vm1295 = vcmask 146432
      %1296 = vst.msk [vmem:[#allocation5] sm:$0xff] %vm1295, %v1293
      %1299 = vrot.lane.b32.xlu0 %v1288, 18
      %v1300 = vpop.permute.xlu0 %1299
      %1301 = vrot.lane.b32.xlu0 %v1289, 18
      %v1302 = vpop.permute.xlu0 %1301
      %1303 = vrot.lane.b32.xlu0 %v1290, 18
      %v1304 = vpop.permute.xlu0 %1303
      %v1305 = vsel %vm1295, %v1300, %v1302
      %v1306 = vsel %vm1295, %v1302, %v1304
      %vm1310 = vcmask 1047696
      %1311 = vst.msk [vmem:[#allocation5] sm:$0xff] %vm1310, %v1300
      %1312 = vst [vmem:[#allocation5 + $0x8] sm:$0xff] %v1305
      %vm1313 = vcmask 408576
      %1314 = vst.msk [vmem:[#allocation5 + $0x10] sm:$0xff] %vm1313, %v1306
      %1315 = vrot.lane.b32.xlu0 %v1289, 54
      %v1316 = vpop.permute.xlu0 %1315
      %1317 = vrot.lane.b32.xlu0 %v1290, 54
      %v1318 = vpop.permute.xlu0 %1317
      %vm1319 = vcmask 441344
      %v1320 = vsel %vm1319, %v1316, %v1318
      %vm1322 = vcmask 556432
      %1323 = vst.msk [vmem:[#allocation5 + $0x10] sm:$0xff] %vm1322, %v1320
      %vm1324 = vcmask 704032
      %1325 = vst.msk [vmem:[#allocation5 + $0x10] sm:$0xff] %vm1324, 0.0
      %v1326 = vld [vmem:[#allocation5] sm:$0xff]
      %v1327 = vld [vmem:[#allocation5 + $0x8] sm:$0xff]
      %v1328 = vld [vmem:[#allocation5 + $0x10] sm:$0xff]
      %1329 = vst [vmem:[#allocation3] sm:$0xff] %v1326
      %1330 = vst [vmem:[#allocation3 + $0x8] sm:$0xff] %v1327
      %1331 = vst.msk [vmem:[#allocation3 + $0x10] sm:$0xff] %vm394, %v1328
      %1335 = vrot.lane.b32.xlu0 %v1326, 127
      %v1336 = vpop.permute.xlu0 %1335
      %1337 = vrot.lane.b32.xlu0 %v1327, 127
      %v1338 = vpop.permute.xlu0 %1337
      %1339 = vrot.lane.b32.xlu0 %v1328, 127
      %v1340 = vpop.permute.xlu0 %1339
      %v1341 = vsel %vm405, %v1336, %v1338
      %v1342 = vsel %vm405, %v1338, %v1340
      %1346 = vst [vmem:[#allocation3 + $0x18] sm:$0xff] %v1341
      %1347 = vst [vmem:[#allocation3 + $0x20] sm:$0xff] %v1342
      %1348 = vst.msk [vmem:[#allocation3 + $0x28] sm:$0xff] %vm394, %v1340
      %1349 = vrot.lane.b32.xlu0 %v1326, 126
      %v1350 = vpop.permute.xlu0 %1349
      %1351 = vrot.lane.b32.xlu0 %v1327, 126
      %v1352 = vpop.permute.xlu0 %1351
      %1353 = vrot.lane.b32.xlu0 %v1328, 126
      %v1354 = vpop.permute.xlu0 %1353
      %v1355 = vsel %vm420, %v1350, %v1352
      %v1356 = vsel %vm420, %v1352, %v1354
      %1360 = vst [vmem:[#allocation3 + $0x30] sm:$0xff] %v1355
      %1361 = vst [vmem:[#allocation3 + $0x38] sm:$0xff] %v1356
      %1362 = vst.msk [vmem:[#allocation3 + $0x40] sm:$0xff] %vm394, %v1354
      %1363 = vrot.lane.b32.xlu0 %v1326, 110
      %v1364 = vpop.permute.xlu0 %1363
      %1365 = vrot.lane.b32.xlu0 %v1327, 110
      %v1366 = vpop.permute.xlu0 %1365
      %1367 = vrot.lane.b32.xlu0 %v1328, 110
      %v1368 = vpop.permute.xlu0 %1367
      %v1369 = vsel %vm435, %v1364, %v1366
      %v1370 = vsel %vm435, %v1366, %v1368
      %1374 = vst [vmem:[#allocation3 + $0x48] sm:$0xff] %v1369
      %1375 = vst [vmem:[#allocation3 + $0x50] sm:$0xff] %v1370
      %1376 = vst.msk [vmem:[#allocation3 + $0x58] sm:$0xff] %vm394, %v1368
      %1377 = vrot.lane.b32.xlu0 %v1326, 109
      %v1378 = vpop.permute.xlu0 %1377
      %1379 = vrot.lane.b32.xlu0 %v1327, 109
      %v1380 = vpop.permute.xlu0 %1379
      %1381 = vrot.lane.b32.xlu0 %v1328, 109
      %v1382 = vpop.permute.xlu0 %1381
      %v1383 = vsel %vm450, %v1378, %v1380
      %v1384 = vsel %vm450, %v1380, %v1382
      %1388 = vst [vmem:[#allocation3 + $0x60] sm:$0xff] %v1383
      %1389 = vst [vmem:[#allocation3 + $0x68] sm:$0xff] %v1384
      %1390 = vst.msk [vmem:[#allocation3 + $0x70] sm:$0xff] %vm394, %v1382
      %1391 = vrot.lane.b32.xlu0 %v1326, 108
      %v1392 = vpop.permute.xlu0 %1391
      %1393 = vrot.lane.b32.xlu0 %v1327, 108
      %v1394 = vpop.permute.xlu0 %1393
      %1395 = vrot.lane.b32.xlu0 %v1328, 108
      %v1396 = vpop.permute.xlu0 %1395
      %v1397 = vsel %vm465, %v1392, %v1394
      %v1398 = vsel %vm465, %v1394, %v1396
      %1402 = vst [vmem:[#allocation3 + $0x78] sm:$0xff] %v1397
      %1403 = vst [vmem:[#allocation3 + $0x80] sm:$0xff] %v1398
      %1404 = vst.msk [vmem:[#allocation3 + $0x88] sm:$0xff] %vm394, %v1396
      %1405 = vrot.lane.b32.xlu0 %v1326, 92
      %v1406 = vpop.permute.xlu0 %1405
      %1407 = vrot.lane.b32.xlu0 %v1327, 92
      %v1408 = vpop.permute.xlu0 %1407
      %1409 = vrot.lane.b32.xlu0 %v1328, 92
      %v1410 = vpop.permute.xlu0 %1409
      %v1411 = vsel %vm480, %v1406, %v1408
      %v1412 = vsel %vm480, %v1408, %v1410
      %1416 = vst [vmem:[#allocation3 + $0x90] sm:$0xff] %v1411
      %1417 = vst [vmem:[#allocation3 + $0x98] sm:$0xff] %v1412
      %1418 = vst.msk [vmem:[#allocation3 + $0xa0] sm:$0xff] %vm394, %v1410
      %1419 = vrot.lane.b32.xlu0 %v1326, 91
      %v1420 = vpop.permute.xlu0 %1419
      %1421 = vrot.lane.b32.xlu0 %v1327, 91
      %v1422 = vpop.permute.xlu0 %1421
      %1423 = vrot.lane.b32.xlu0 %v1328, 91
      %v1424 = vpop.permute.xlu0 %1423
      %v1425 = vsel %vm495, %v1420, %v1422
      %v1426 = vsel %vm495, %v1422, %v1424
      %1430 = vst [vmem:[#allocation3 + $0xa8] sm:$0xff] %v1425
      %1431 = vst [vmem:[#allocation3 + $0xb0] sm:$0xff] %v1426
      %1432 = vst.msk [vmem:[#allocation3 + $0xb8] sm:$0xff] %vm394, %v1424
      %1433 = vrot.lane.b32.xlu0 %v1326, 90
      %v1434 = vpop.permute.xlu0 %1433
      %1435 = vrot.lane.b32.xlu0 %v1327, 90
      %v1436 = vpop.permute.xlu0 %1435
      %1437 = vrot.lane.b32.xlu0 %v1328, 90
      %v1438 = vpop.permute.xlu0 %1437
      %v1439 = vsel %vm510, %v1434, %v1436
      %v1440 = vsel %vm510, %v1436, %v1438
      %1444 = vst [vmem:[#allocation3 + $0xc0] sm:$0xff] %v1439
      %1445 = vst [vmem:[#allocation3 + $0xc8] sm:$0xff] %v1440
      %1446 = vst.msk [vmem:[#allocation3 + $0xd0] sm:$0xff] %vm394, %v1438
      %v1447 = vld [vmem:[%s6] sm:$0xff]
      %v1448 = vld [vmem:[#allocation3] sm:$0xff]
      %v1449 = vld [vmem:[#allocation3 + $0x8] sm:$0xff]
      %v1450 = vld [vmem:[#allocation3 + $0x10] sm:$0xff]
      %v1451 = vld [vmem:[#allocation3 + $0x18] sm:$0xff]
      %v1452 = vld [vmem:[#allocation3 + $0x20] sm:$0xff]
      %v1453 = vld [vmem:[#allocation3 + $0x28] sm:$0xff]
      %v1454 = vld [vmem:[#allocation3 + $0x30] sm:$0xff]
      %v1455 = vld [vmem:[#allocation3 + $0x38] sm:$0xff]
      %v1456 = vld [vmem:[#allocation3 + $0x40] sm:$0xff]
      %v1457 = vld [vmem:[#allocation3 + $0x48] sm:$0xff]
      %v1458 = vld [vmem:[#allocation3 + $0x50] sm:$0xff]
      %v1459 = vld [vmem:[#allocation3 + $0x58] sm:$0xff]
      %v1460 = vld [vmem:[#allocation3 + $0x60] sm:$0xff]
      %v1461 = vld [vmem:[#allocation3 + $0x68] sm:$0xff]
      %v1462 = vld [vmem:[#allocation3 + $0x70] sm:$0xff]
      %v1463 = vld [vmem:[#allocation3 + $0x78] sm:$0xff]
      %v1464 = vld [vmem:[#allocation3 + $0x80] sm:$0xff]
      %v1465 = vld [vmem:[#allocation3 + $0x88] sm:$0xff]
      %v1466 = vld [vmem:[#allocation3 + $0x90] sm:$0xff]
      %v1467 = vld [vmem:[#allocation3 + $0x98] sm:$0xff]
      %v1468 = vld [vmem:[#allocation3 + $0xa0] sm:$0xff]
      %v1469 = vld [vmem:[#allocation3 + $0xa8] sm:$0xff]
      %v1470 = vld [vmem:[#allocation3 + $0xb0] sm:$0xff]
      %v1471 = vld [vmem:[#allocation3 + $0xb8] sm:$0xff]
      %v1472 = vld [vmem:[#allocation3 + $0xc0] sm:$0xff]
      %v1473 = vld [vmem:[#allocation3 + $0xc8] sm:$0xff]
      %v1474 = vld [vmem:[#allocation3 + $0xd0] sm:$0xff]
      %v1475 = vld [vmem:[%s7] sm:$0xff]
      %1477 = vset.pattern.permute.xlu0 0
      %1478 = vperm.xlu0 %1477, %v1475
      %v1479 = vpop.permute.xlu0 %1478
      %v1482 = vsel %vm553, %v1447, 0
      %1484 = vmatprep.subr.mxu0 0.0
      %1485 = vmatpush1.msra.mxu0 0.0
      %1486 = vmatprep.subr.mxu0 0.0
      %1487 = vmatpush1.msra.mxu0 0.0
      %1488 = vmatprep.subr.mxu0 0.0
      %1489 = vmatpush1.msra.mxu0 0.0
      %1490 = vmatprep.subr.mxu0 0.0
      %1491 = vmatpush1.msra.mxu0 0.0
      %1492 = vmatprep.subr.mxu0 0.0
      %1493 = vmatpush1.msra.mxu0 0.0
      %1494 = vmatprep.subr.mxu0 0.0
      %1495 = vmatpush1.msra.mxu0 0.0
      %1496 = vmatprep.subr.mxu0 0.0
      %1497 = vmatpush1.msra.mxu0 0.0
      %1498 = vmatprep.subr.mxu0 %v1473
      %1499 = vmatpush1.msra.mxu0 %v1472
      %1500 = vmatprep.subr.mxu0 %v1470
      %1501 = vmatpush1.msra.mxu0 %v1469
      %1502 = vmatprep.subr.mxu0 %v1467
      %1503 = vmatpush1.msra.mxu0 %v1466
      %1504 = vmatprep.subr.mxu0 %v1464
      %1505 = vmatpush1.msra.mxu0 %v1463
      %1506 = vmatprep.subr.mxu0 %v1461
      %1507 = vmatpush1.msra.mxu0 %v1460
      %1508 = vmatprep.subr.mxu0 %v1458
      %1509 = vmatpush1.msra.mxu0 %v1457
      %1510 = vmatprep.subr.mxu0 %v1455
      %1511 = vmatpush1.msra.mxu0 %v1454
      %1512 = vmatprep.subr.mxu0 %v1452
      %1513 = vmatpush1.msra.mxu0 %v1451
      %1514 = vmatprep.subr.mxu0 %v1449
      %1515 = vmatpush1.msra.mxu0 %v1448
      %1516 = vmatprep.subr.mxu0 0.0
      %1517 = vmatpush2.msra.mxu0 0.0
      %1518 = vmatprep.subr.mxu0 0.0
      %1519 = vmatpush2.msra.mxu0 0.0
      %1520 = vmatprep.subr.mxu0 0.0
      %1521 = vmatpush2.msra.mxu0 0.0
      %1522 = vmatprep.subr.mxu0 0.0
      %1523 = vmatpush2.msra.mxu0 0.0
      %1524 = vmatprep.subr.mxu0 0.0
      %1525 = vmatpush2.msra.mxu0 0.0
      %1526 = vmatprep.subr.mxu0 0.0
      %1527 = vmatpush2.msra.mxu0 0.0
      %1528 = vmatprep.subr.mxu0 0.0
      %1529 = vmatpush2.msra.mxu0 0.0
      %1530 = vmatprep.subr.mxu0 0.0
      %1531 = vmatpush2.msra.mxu0 0.0
      %1532 = vmatprep.subr.mxu0 0.0
      %1533 = vmatpush2.msra.mxu0 0.0
      %1534 = vmatprep.subr.mxu0 0.0
      %1535 = vmatpush2.msra.mxu0 0.0
      %1536 = vmatprep.subr.mxu0 0.0
      %1537 = vmatpush2.msra.mxu0 0.0
      %1538 = vmatprep.subr.mxu0 0.0
      %1539 = vmatpush2.msra.mxu0 0.0
      %1540 = vmatprep.subr.mxu0 0.0
      %1541 = vmatpush2.msra.mxu0 0.0
      %1542 = vmatprep.subr.mxu0 0.0
      %1543 = vmatpush2.msra.mxu0 0.0
      %1544 = vmatprep.subr.mxu0 0.0
      %1545 = vmatpush2.msra.mxu0 0.0
      %1546 = vmatprep.subr.mxu0 0.0
      %1547 = vmatpush2.msra.mxu0 0.0
      %1548 = vmatprep.mubr.f32.mxu0 0.0
      %1549 = vmatmul.mubr.f32.gmra.mxu0 %v1482
      %v1550 = vpop.f32.mrf.mxu0
      %v1551 = vadd.f32 %v1479, %v1550
      %v1552 = vpop.f32.mrf.mxu0
      %v1553 = vadd.f32 %v1479, %v1552
      %1554 = vdwg.mxu0
      %1555 = vmatprep.subr.mxu0 0.0
      %1556 = vmatpush1.msra.mxu0 0.0
      %1557 = vmatprep.subr.mxu0 0.0
      %1558 = vmatpush1.msra.mxu0 0.0
      %1559 = vmatprep.subr.mxu0 0.0
      %1560 = vmatpush1.msra.mxu0 0.0
      %1561 = vmatprep.subr.mxu0 0.0
      %1562 = vmatpush1.msra.mxu0 0.0
      %1563 = vmatprep.subr.mxu0 0.0
      %1564 = vmatpush1.msra.mxu0 0.0
      %1565 = vmatprep.subr.mxu0 0.0
      %1566 = vmatpush1.msra.mxu0 0.0
      %1567 = vmatprep.subr.mxu0 0.0
      %1568 = vmatpush1.msra.mxu0 0.0
      %1569 = vmatprep.subr.mxu0 0.0
      %1570 = vmatpush1.msra.mxu0 %v1474
      %1571 = vmatprep.subr.mxu0 0.0
      %1572 = vmatpush1.msra.mxu0 %v1471
      %1573 = vmatprep.subr.mxu0 0.0
      %1574 = vmatpush1.msra.mxu0 %v1468
      %1575 = vmatprep.subr.mxu0 0.0
      %1576 = vmatpush1.msra.mxu0 %v1465
      %1577 = vmatprep.subr.mxu0 0.0
      %1578 = vmatpush1.msra.mxu0 %v1462
      %1579 = vmatprep.subr.mxu0 0.0
      %1580 = vmatpush1.msra.mxu0 %v1459
      %1581 = vmatprep.subr.mxu0 0.0
      %1582 = vmatpush1.msra.mxu0 %v1456
      %1583 = vmatprep.subr.mxu0 0.0
      %1584 = vmatpush1.msra.mxu0 %v1453
      %1585 = vmatprep.subr.mxu0 0.0
      %1586 = vmatpush1.msra.mxu0 %v1450
      %1587 = vmatprep.subr.mxu0 0.0
      %1588 = vmatpush2.msra.mxu0 0.0
      %1589 = vmatprep.subr.mxu0 0.0
      %1590 = vmatpush2.msra.mxu0 0.0
      %1591 = vmatprep.subr.mxu0 0.0
      %1592 = vmatpush2.msra.mxu0 0.0
      %1593 = vmatprep.subr.mxu0 0.0
      %1594 = vmatpush2.msra.mxu0 0.0
      %1595 = vmatprep.subr.mxu0 0.0
      %1596 = vmatpush2.msra.mxu0 0.0
      %1597 = vmatprep.subr.mxu0 0.0
      %1598 = vmatpush2.msra.mxu0 0.0
      %1599 = vmatprep.subr.mxu0 0.0
      %1600 = vmatpush2.msra.mxu0 0.0
      %1601 = vmatprep.subr.mxu0 0.0
      %1602 = vmatpush2.msra.mxu0 0.0
      %1603 = vmatprep.subr.mxu0 0.0
      %1604 = vmatpush2.msra.mxu0 0.0
      %1605 = vmatprep.subr.mxu0 0.0
      %1606 = vmatpush2.msra.mxu0 0.0
      %1607 = vmatprep.subr.mxu0 0.0
      %1608 = vmatpush2.msra.mxu0 0.0
      %1609 = vmatprep.subr.mxu0 0.0
      %1610 = vmatpush2.msra.mxu0 0.0
      %1611 = vmatprep.subr.mxu0 0.0
      %1612 = vmatpush2.msra.mxu0 0.0
      %1613 = vmatprep.subr.mxu0 0.0
      %1614 = vmatpush2.msra.mxu0 0.0
      %1615 = vmatprep.subr.mxu0 0.0
      %1616 = vmatpush2.msra.mxu0 0.0
      %1617 = vmatprep.subr.mxu0 0.0
      %1618 = vmatpush2.msra.mxu0 0.0
      %1619 = vmatprep.mubr.f32.mxu0 0.0
      %1620 = vmatmul.mubr.f32.gmra.mxu0 %v1482
      %v1621 = vpop.f32.mrf.mxu0
      %v1622 = vadd.f32 %v1479, %v1621
      %v1623 = vpop.f32.mrf.mxu0
      %1624 = vdwg.mxu0
      %v1625 = vxor.u32 %v1551, 2147483648
      %v1626 = vxor.u32 %v1553, 2147483648
      %v1627 = vxor.u32 %v1622, 2147483648
      %v1628 = vmul.f32 %v1625, 1.442695
      %v1629 = vpow.pop %v1628
      %v1630 = vmul.f32 %v1626, 1.442695
      %v1631 = vpow.pop %v1630
      %v1632 = vmul.f32 %v1627, 1.442695
      %v1633 = vpow.pop %v1632
      %v1634 = vadd.f32 %v1629, 1.0
      %v1635 = vadd.f32 %v1631, 1.0
      %v1636 = vadd.f32 %v1633, 1.0
      %v1637 = vrcp.pop %v1634
      %v1638 = vmul.f32 1.0, %v1637
      %v1639 = vrcp.pop %v1635
      %v1640 = vmul.f32 1.0, %v1639
      %v1641 = vrcp.pop %v1636
      %v1642 = vmul.f32 1.0, %v1641
      %v1643 = vmul.f32 %v1551, %v1638
      %v1644 = vmul.f32 %v1553, %v1640
      %v1645 = vmul.f32 %v1622, %v1642
      %v1646 = vsel %vm732, %v1643, 0.0
      %v1647 = vsel %vm733, %v1644, 0.0
      %v1648 = vsel %vm734, %v1645, 0.0
      %v1650 = vsel %vm394, %v1648, 0
      %1652 = vmatprep.subr.mxu0 0.0
      %1653 = vmatpush1.msra.mxu0 1.0
      %1654 = vmatprep.subr.mxu0 0.0
      %1655 = vmatpush1.msra.mxu0 1.0
      %1656 = vmatprep.subr.mxu0 0.0
      %1657 = vmatpush1.msra.mxu0 1.0
      %1658 = vmatprep.subr.mxu0 0.0
      %1659 = vmatpush1.msra.mxu0 1.0
      %1660 = vmatprep.subr.mxu0 0.0
      %1661 = vmatpush1.msra.mxu0 1.0
      %1662 = vmatprep.subr.mxu0 0.0
      %1663 = vmatpush1.msra.mxu0 1.0
      %1664 = vmatprep.subr.mxu0 0.0
      %1665 = vmatpush1.msra.mxu0 1.0
      %1666 = vmatprep.subr.mxu0 0.0
      %1667 = vmatpush1.msra.mxu0 1.0
      %1668 = vmatprep.subr.mxu0 0.0
      %1669 = vmatpush1.msra.mxu0 1.0
      %1670 = vmatprep.subr.mxu0 0.0
      %1671 = vmatpush1.msra.mxu0 1.0
      %1672 = vmatprep.subr.mxu0 0.0
      %1673 = vmatpush1.msra.mxu0 1.0
      %1674 = vmatprep.subr.mxu0 0.0
      %1675 = vmatpush1.msra.mxu0 1.0
      %1676 = vmatprep.subr.mxu0 0.0
      %1677 = vmatpush1.msra.mxu0 1.0
      %1678 = vmatprep.subr.mxu0 0.0
      %1679 = vmatpush1.msra.mxu0 1.0
      %1680 = vmatprep.subr.mxu0 0.0
      %1681 = vmatpush1.msra.mxu0 1.0
      %1682 = vmatprep.subr.mxu0 0.0
      %1683 = vmatpush1.msra.mxu0 1.0
      %1684 = vmatprep.subr.mxu0 0.0
      %1685 = vmatpush2.msra.mxu0 1.0
      %1686 = vmatprep.subr.mxu0 0.0
      %1687 = vmatpush2.msra.mxu0 1.0
      %1688 = vmatprep.subr.mxu0 0.0
      %1689 = vmatpush2.msra.mxu0 1.0
      %1690 = vmatprep.subr.mxu0 0.0
      %1691 = vmatpush2.msra.mxu0 1.0
      %1692 = vmatprep.subr.mxu0 0.0
      %1693 = vmatpush2.msra.mxu0 1.0
      %1694 = vmatprep.subr.mxu0 0.0
      %1695 = vmatpush2.msra.mxu0 1.0
      %1696 = vmatprep.subr.mxu0 0.0
      %1697 = vmatpush2.msra.mxu0 1.0
      %1698 = vmatprep.subr.mxu0 0.0
      %1699 = vmatpush2.msra.mxu0 1.0
      %1700 = vmatprep.subr.mxu0 0.0
      %1701 = vmatpush2.msra.mxu0 1.0
      %1702 = vmatprep.subr.mxu0 0.0
      %1703 = vmatpush2.msra.mxu0 1.0
      %1704 = vmatprep.subr.mxu0 0.0
      %1705 = vmatpush2.msra.mxu0 1.0
      %1706 = vmatprep.subr.mxu0 0.0
      %1707 = vmatpush2.msra.mxu0 1.0
      %1708 = vmatprep.subr.mxu0 0.0
      %1709 = vmatpush2.msra.mxu0 1.0
      %1710 = vmatprep.subr.mxu0 0.0
      %1711 = vmatpush2.msra.mxu0 1.0
      %1712 = vmatprep.subr.mxu0 0.0
      %1713 = vmatpush2.msra.mxu0 1.0
      %1714 = vmatprep.subr.mxu0 0.0
      %1715 = vmatpush2.msra.mxu0 1.0
      %1716 = vmatprep.mubr.f32.mxu0 %v1647
      %1717 = vmatmul.mubr.f32.gmra.mxu0 %v1646
      %v1718 = vpop.f32.mrf.mxu0
      %v1719 = vadd.f32 0.0, %v1718
      %v1720 = vpop.f32.mrf.mxu0
      %1721 = vdwg.mxu0
      %1722 = vmatprep.subr.mxu0 0.0
      %1723 = vmatpush1.msra.mxu0 0.0
      %1724 = vmatprep.subr.mxu0 0.0
      %1725 = vmatpush1.msra.mxu0 0.0
      %1726 = vmatprep.subr.mxu0 0.0
      %1727 = vmatpush1.msra.mxu0 0.0
      %1728 = vmatprep.subr.mxu0 0.0
      %1729 = vmatpush1.msra.mxu0 0.0
      %1730 = vmatprep.subr.mxu0 0.0
      %1731 = vmatpush1.msra.mxu0 0.0
      %1732 = vmatprep.subr.mxu0 0.0
      %1733 = vmatpush1.msra.mxu0 0.0
      %1734 = vmatprep.subr.mxu0 0.0
      %1735 = vmatpush1.msra.mxu0 0.0
      %1736 = vmatprep.subr.mxu0 0.0
      %1737 = vmatpush1.msra.mxu0 0.0
      %1738 = vmatprep.subr.mxu0 0.0
      %1739 = vmatpush1.msra.mxu0 0.0
      %1740 = vmatprep.subr.mxu0 0.0
      %1741 = vmatpush1.msra.mxu0 0.0
      %1742 = vmatprep.subr.mxu0 0.0
      %1743 = vmatpush1.msra.mxu0 0.0
      %1744 = vmatprep.subr.mxu0 0.0
      %1745 = vmatpush1.msra.mxu0 0.0
      %1746 = vmatprep.subr.mxu0 0.0
      %1747 = vmatpush1.msra.mxu0 1.0
      %1748 = vmatprep.subr.mxu0 0.0
      %1749 = vmatpush1.msra.mxu0 1.0
      %1750 = vmatprep.subr.mxu0 0.0
      %1751 = vmatpush1.msra.mxu0 1.0
      %1752 = vmatprep.subr.mxu0 0.0
      %1753 = vmatpush1.msra.mxu0 1.0
      %1754 = vmatprep.subr.mxu0 0.0
      %1755 = vmatpush2.msra.mxu0 0.0
      %1756 = vmatprep.subr.mxu0 0.0
      %1757 = vmatpush2.msra.mxu0 0.0
      %1758 = vmatprep.subr.mxu0 0.0
      %1759 = vmatpush2.msra.mxu0 0.0
      %1760 = vmatprep.subr.mxu0 0.0
      %1761 = vmatpush2.msra.mxu0 0.0
      %1762 = vmatprep.subr.mxu0 0.0
      %1763 = vmatpush2.msra.mxu0 0.0
      %1764 = vmatprep.subr.mxu0 0.0
      %1765 = vmatpush2.msra.mxu0 0.0
      %1766 = vmatprep.subr.mxu0 0.0
      %1767 = vmatpush2.msra.mxu0 0.0
      %1768 = vmatprep.subr.mxu0 0.0
      %1769 = vmatpush2.msra.mxu0 0.0
      %1770 = vmatprep.subr.mxu0 0.0
      %1771 = vmatpush2.msra.mxu0 0.0
      %1772 = vmatprep.subr.mxu0 0.0
      %1773 = vmatpush2.msra.mxu0 0.0
      %1774 = vmatprep.subr.mxu0 0.0
      %1775 = vmatpush2.msra.mxu0 0.0
      %1776 = vmatprep.subr.mxu0 0.0
      %1777 = vmatpush2.msra.mxu0 0.0
      %1778 = vmatprep.subr.mxu0 0.0
      %1779 = vmatpush2.msra.mxu0 0.0
      %1780 = vmatprep.subr.mxu0 0.0
      %1781 = vmatpush2.msra.mxu0 0.0
      %1782 = vmatprep.subr.mxu0 0.0
      %1783 = vmatpush2.msra.mxu0 0.0
      %1784 = vmatprep.subr.mxu0 0.0
      %1785 = vmatpush2.msra.mxu0 0.0
      %1786 = vmatprep.mubr.f32.mxu0 0.0
      %1787 = vmatmul.mubr.f32.gmra.mxu0 %v1650
      %v1788 = vpop.f32.mrf.mxu0
      %v1789 = vadd.f32 %v1719, %v1788
      %v1790 = vpop.f32.mrf.mxu0
      %1791 = vdwg.mxu0
      %v1792 = vmul.f32 %v1646, %v1646
      %v1793 = vmul.f32 %v1647, %v1647
      %v1794 = vmul.f32 %v1648, %v1648
      %v1796 = vsel %vm394, %v1794, 0
      %1798 = vmatprep.subr.mxu0 0.0
      %1799 = vmatpush1.msra.mxu0 1.0
      %1800 = vmatprep.subr.mxu0 0.0
      %1801 = vmatpush1.msra.mxu0 1.0
      %1802 = vmatprep.subr.mxu0 0.0
      %1803 = vmatpush1.msra.mxu0 1.0
      %1804 = vmatprep.subr.mxu0 0.0
      %1805 = vmatpush1.msra.mxu0 1.0
      %1806 = vmatprep.subr.mxu0 0.0
      %1807 = vmatpush1.msra.mxu0 1.0
      %1808 = vmatprep.subr.mxu0 0.0
      %1809 = vmatpush1.msra.mxu0 1.0
      %1810 = vmatprep.subr.mxu0 0.0
      %1811 = vmatpush1.msra.mxu0 1.0
      %1812 = vmatprep.subr.mxu0 0.0
      %1813 = vmatpush1.msra.mxu0 1.0
      %1814 = vmatprep.subr.mxu0 0.0
      %1815 = vmatpush1.msra.mxu0 1.0
      %1816 = vmatprep.subr.mxu0 0.0
      %1817 = vmatpush1.msra.mxu0 1.0
      %1818 = vmatprep.subr.mxu0 0.0
      %1819 = vmatpush1.msra.mxu0 1.0
      %1820 = vmatprep.subr.mxu0 0.0
      %1821 = vmatpush1.msra.mxu0 1.0
      %1822 = vmatprep.subr.mxu0 0.0
      %1823 = vmatpush1.msra.mxu0 1.0
      %1824 = vmatprep.subr.mxu0 0.0
      %1825 = vmatpush1.msra.mxu0 1.0
      %1826 = vmatprep.subr.mxu0 0.0
      %1827 = vmatpush1.msra.mxu0 1.0
      %1828 = vmatprep.subr.mxu0 0.0
      %1829 = vmatpush1.msra.mxu0 1.0
      %1830 = vmatprep.subr.mxu0 0.0
      %1831 = vmatpush2.msra.mxu0 1.0
      %1832 = vmatprep.subr.mxu0 0.0
      %1833 = vmatpush2.msra.mxu0 1.0
      %1834 = vmatprep.subr.mxu0 0.0
      %1835 = vmatpush2.msra.mxu0 1.0
      %1836 = vmatprep.subr.mxu0 0.0
      %1837 = vmatpush2.msra.mxu0 1.0
      %1838 = vmatprep.subr.mxu0 0.0
      %1839 = vmatpush2.msra.mxu0 1.0
      %1840 = vmatprep.subr.mxu0 0.0
      %1841 = vmatpush2.msra.mxu0 1.0
      %1842 = vmatprep.subr.mxu0 0.0
      %1843 = vmatpush2.msra.mxu0 1.0
      %1844 = vmatprep.subr.mxu0 0.0
      %1845 = vmatpush2.msra.mxu0 1.0
      %1846 = vmatprep.subr.mxu0 0.0
      %1847 = vmatpush2.msra.mxu0 1.0
      %1848 = vmatprep.subr.mxu0 0.0
      %1849 = vmatpush2.msra.mxu0 1.0
      %1850 = vmatprep.subr.mxu0 0.0
      %1851 = vmatpush2.msra.mxu0 1.0
      %1852 = vmatprep.subr.mxu0 0.0
      %1853 = vmatpush2.msra.mxu0 1.0
      %1854 = vmatprep.subr.mxu0 0.0
      %1855 = vmatpush2.msra.mxu0 1.0
      %1856 = vmatprep.subr.mxu0 0.0
      %1857 = vmatpush2.msra.mxu0 1.0
      %1858 = vmatprep.subr.mxu0 0.0
      %1859 = vmatpush2.msra.mxu0 1.0
      %1860 = vmatprep.subr.mxu0 0.0
      %1861 = vmatpush2.msra.mxu0 1.0
      %1862 = vmatprep.mubr.f32.mxu0 %v1793
      %1863 = vmatmul.mubr.f32.gmra.mxu0 %v1792
      %v1864 = vpop.f32.mrf.mxu0
      %v1865 = vadd.f32 0.0, %v1864
      %v1866 = vpop.f32.mrf.mxu0
      %1867 = vdwg.mxu0
      %1868 = vmatprep.subr.mxu0 0.0
      %1869 = vmatpush1.msra.mxu0 0.0
      %1870 = vmatprep.subr.mxu0 0.0
      %1871 = vmatpush1.msra.mxu0 0.0
      %1872 = vmatprep.subr.mxu0 0.0
      %1873 = vmatpush1.msra.mxu0 0.0
      %1874 = vmatprep.subr.mxu0 0.0
      %1875 = vmatpush1.msra.mxu0 0.0
      %1876 = vmatprep.subr.mxu0 0.0
      %1877 = vmatpush1.msra.mxu0 0.0
      %1878 = vmatprep.subr.mxu0 0.0
      %1879 = vmatpush1.msra.mxu0 0.0
      %1880 = vmatprep.subr.mxu0 0.0
      %1881 = vmatpush1.msra.mxu0 0.0
      %1882 = vmatprep.subr.mxu0 0.0
      %1883 = vmatpush1.msra.mxu0 0.0
      %1884 = vmatprep.subr.mxu0 0.0
      %1885 = vmatpush1.msra.mxu0 0.0
      %1886 = vmatprep.subr.mxu0 0.0
      %1887 = vmatpush1.msra.mxu0 0.0
      %1888 = vmatprep.subr.mxu0 0.0
      %1889 = vmatpush1.msra.mxu0 0.0
      %1890 = vmatprep.subr.mxu0 0.0
      %1891 = vmatpush1.msra.mxu0 0.0
      %1892 = vmatprep.subr.mxu0 0.0
      %1893 = vmatpush1.msra.mxu0 1.0
      %1894 = vmatprep.subr.mxu0 0.0
      %1895 = vmatpush1.msra.mxu0 1.0
      %1896 = vmatprep.subr.mxu0 0.0
      %1897 = vmatpush1.msra.mxu0 1.0
      %1898 = vmatprep.subr.mxu0 0.0
      %1899 = vmatpush1.msra.mxu0 1.0
      %1900 = vmatprep.subr.mxu0 0.0
      %1901 = vmatpush2.msra.mxu0 0.0
      %1902 = vmatprep.subr.mxu0 0.0
      %1903 = vmatpush2.msra.mxu0 0.0
      %1904 = vmatprep.subr.mxu0 0.0
      %1905 = vmatpush2.msra.mxu0 0.0
      %1906 = vmatprep.subr.mxu0 0.0
      %1907 = vmatpush2.msra.mxu0 0.0
      %1908 = vmatprep.subr.mxu0 0.0
      %1909 = vmatpush2.msra.mxu0 0.0
      %1910 = vmatprep.subr.mxu0 0.0
      %1911 = vmatpush2.msra.mxu0 0.0
      %1912 = vmatprep.subr.mxu0 0.0
      %1913 = vmatpush2.msra.mxu0 0.0
      %1914 = vmatprep.subr.mxu0 0.0
      %1915 = vmatpush2.msra.mxu0 0.0
      %1916 = vmatprep.subr.mxu0 0.0
      %1917 = vmatpush2.msra.mxu0 0.0
      %1918 = vmatprep.subr.mxu0 0.0
      %1919 = vmatpush2.msra.mxu0 0.0
      %1920 = vmatprep.subr.mxu0 0.0
      %1921 = vmatpush2.msra.mxu0 0.0
      %1922 = vmatprep.subr.mxu0 0.0
      %1923 = vmatpush2.msra.mxu0 0.0
      %1924 = vmatprep.subr.mxu0 0.0
      %1925 = vmatpush2.msra.mxu0 0.0
      %1926 = vmatprep.subr.mxu0 0.0
      %1927 = vmatpush2.msra.mxu0 0.0
      %1928 = vmatprep.subr.mxu0 0.0
      %1929 = vmatpush2.msra.mxu0 0.0
      %1930 = vmatprep.subr.mxu0 0.0
      %1931 = vmatpush2.msra.mxu0 0.0
      %1932 = vmatprep.mubr.f32.mxu0 0.0
      %1933 = vmatmul.mubr.f32.gmra.mxu0 %v1796
      %v1934 = vpop.f32.mrf.mxu0
      %v1935 = vadd.f32 %v1865, %v1934
      %v1936 = vpop.f32.mrf.mxu0
      %1937 = vdwg.mxu0
      %v1938 = vld [vmem:[%s10] sm:$0xff]
      %v1940 = vsel %vm1028, %v1938, 0
      %1942 = vmatprep.subr.mxu0 0.0
      %1943 = vmatpush1.msra.mxu0 0.0
      %1944 = vmatprep.subr.mxu0 0.0
      %1945 = vmatpush1.msra.mxu0 0.0
      %1946 = vmatprep.subr.mxu0 0.0
      %1947 = vmatpush1.msra.mxu0 0.0
      %1948 = vmatprep.subr.mxu0 0.0
      %1949 = vmatpush1.msra.mxu0 0.0
      %1950 = vmatprep.subr.mxu0 0.0
      %1951 = vmatpush1.msra.mxu0 0.0
      %1952 = vmatprep.subr.mxu0 0.0
      %1953 = vmatpush1.msra.mxu0 0.0
      %1954 = vmatprep.subr.mxu0 0.0
      %1955 = vmatpush1.msra.mxu0 0.0
      %1956 = vmatprep.subr.mxu0 0.0
      %1957 = vmatpush1.msra.mxu0 0.0
      %1958 = vmatprep.subr.mxu0 0.0
      %1959 = vmatpush1.msra.mxu0 0.0
      %1960 = vmatprep.subr.mxu0 0.0
      %1961 = vmatpush1.msra.mxu0 0.0
      %1962 = vmatprep.subr.mxu0 0.0
      %1963 = vmatpush1.msra.mxu0 0.0
      %1964 = vmatprep.subr.mxu0 0.0
      %1965 = vmatpush1.msra.mxu0 0.0
      %1966 = vmatprep.subr.mxu0 0.0
      %1967 = vmatpush1.msra.mxu0 0.0
      %1968 = vmatprep.subr.mxu0 0.0
      %1969 = vmatpush1.msra.mxu0 0.0
      %1970 = vmatprep.subr.mxu0 0.0
      %1971 = vmatpush1.msra.mxu0 0.0
      %1972 = vmatprep.subr.mxu0 0.0
      %1973 = vmatpush1.msra.mxu0 %v1789
      %1974 = vmatprep.subr.mxu0 0.0
      %1975 = vmatpush2.msra.mxu0 0.0
      %1976 = vmatprep.subr.mxu0 0.0
      %1977 = vmatpush2.msra.mxu0 0.0
      %1978 = vmatprep.subr.mxu0 0.0
      %1979 = vmatpush2.msra.mxu0 0.0
      %1980 = vmatprep.subr.mxu0 0.0
      %1981 = vmatpush2.msra.mxu0 0.0
      %1982 = vmatprep.subr.mxu0 0.0
      %1983 = vmatpush2.msra.mxu0 0.0
      %1984 = vmatprep.subr.mxu0 0.0
      %1985 = vmatpush2.msra.mxu0 0.0
      %1986 = vmatprep.subr.mxu0 0.0
      %1987 = vmatpush2.msra.mxu0 0.0
      %1988 = vmatprep.subr.mxu0 0.0
      %1989 = vmatpush2.msra.mxu0 0.0
      %1990 = vmatprep.subr.mxu0 0.0
      %1991 = vmatpush2.msra.mxu0 0.0
      %1992 = vmatprep.subr.mxu0 0.0
      %1993 = vmatpush2.msra.mxu0 0.0
      %1994 = vmatprep.subr.mxu0 0.0
      %1995 = vmatpush2.msra.mxu0 0.0
      %1996 = vmatprep.subr.mxu0 0.0
      %1997 = vmatpush2.msra.mxu0 0.0
      %1998 = vmatprep.subr.mxu0 0.0
      %1999 = vmatpush2.msra.mxu0 0.0
      %2000 = vmatprep.subr.mxu0 0.0
      %2001 = vmatpush2.msra.mxu0 0.0
      %2002 = vmatprep.subr.mxu0 0.0
      %2003 = vmatpush2.msra.mxu0 0.0
      %2004 = vmatprep.subr.mxu0 0.0
      %2005 = vmatpush2.msra.mxu0 0.0
      %2006 = vmatprep.mubr.f32.mxu0 0.0
      %2007 = vmatmul.mubr.f32.gmra.mxu0 %v1940
      %v2008 = vpop.f32.mrf.mxu0
      %v2009 = vadd.f32 0.0, %v2008
      %v2010 = vpop.f32.mrf.mxu0
      %2011 = vdwg.mxu0
      %2012 = vmatprep.subr.mxu0 0.0
      %2013 = vmatpush1.msra.mxu0 0.0
      %2014 = vmatprep.subr.mxu0 0.0
      %2015 = vmatpush1.msra.mxu0 0.0
      %2016 = vmatprep.subr.mxu0 0.0
      %2017 = vmatpush1.msra.mxu0 0.0
      %2018 = vmatprep.subr.mxu0 0.0
      %2019 = vmatpush1.msra.mxu0 0.0
      %2020 = vmatprep.subr.mxu0 0.0
      %2021 = vmatpush1.msra.mxu0 0.0
      %2022 = vmatprep.subr.mxu0 0.0
      %2023 = vmatpush1.msra.mxu0 0.0
      %2024 = vmatprep.subr.mxu0 0.0
      %2025 = vmatpush1.msra.mxu0 0.0
      %2026 = vmatprep.subr.mxu0 0.0
      %2027 = vmatpush1.msra.mxu0 0.0
      %2028 = vmatprep.subr.mxu0 0.0
      %2029 = vmatpush1.msra.mxu0 0.0
      %2030 = vmatprep.subr.mxu0 0.0
      %2031 = vmatpush1.msra.mxu0 0.0
      %2032 = vmatprep.subr.mxu0 0.0
      %2033 = vmatpush1.msra.mxu0 0.0
      %2034 = vmatprep.subr.mxu0 0.0
      %2035 = vmatpush1.msra.mxu0 0.0
      %2036 = vmatprep.subr.mxu0 0.0
      %2037 = vmatpush1.msra.mxu0 0.0
      %2038 = vmatprep.subr.mxu0 0.0
      %2039 = vmatpush1.msra.mxu0 0.0
      %2040 = vmatprep.subr.mxu0 0.0
      %2041 = vmatpush1.msra.mxu0 0.0
      %2042 = vmatprep.subr.mxu0 0.0
      %2043 = vmatpush1.msra.mxu0 %v1935
      %2044 = vmatprep.subr.mxu0 0.0
      %2045 = vmatpush2.msra.mxu0 0.0
      %2046 = vmatprep.subr.mxu0 0.0
      %2047 = vmatpush2.msra.mxu0 0.0
      %2048 = vmatprep.subr.mxu0 0.0
      %2049 = vmatpush2.msra.mxu0 0.0
      %2050 = vmatprep.subr.mxu0 0.0
      %2051 = vmatpush2.msra.mxu0 0.0
      %2052 = vmatprep.subr.mxu0 0.0
      %2053 = vmatpush2.msra.mxu0 0.0
      %2054 = vmatprep.subr.mxu0 0.0
      %2055 = vmatpush2.msra.mxu0 0.0
      %2056 = vmatprep.subr.mxu0 0.0
      %2057 = vmatpush2.msra.mxu0 0.0
      %2058 = vmatprep.subr.mxu0 0.0
      %2059 = vmatpush2.msra.mxu0 0.0
      %2060 = vmatprep.subr.mxu0 0.0
      %2061 = vmatpush2.msra.mxu0 0.0
      %2062 = vmatprep.subr.mxu0 0.0
      %2063 = vmatpush2.msra.mxu0 0.0
      %2064 = vmatprep.subr.mxu0 0.0
      %2065 = vmatpush2.msra.mxu0 0.0
      %2066 = vmatprep.subr.mxu0 0.0
      %2067 = vmatpush2.msra.mxu0 0.0
      %2068 = vmatprep.subr.mxu0 0.0
      %2069 = vmatpush2.msra.mxu0 0.0
      %2070 = vmatprep.subr.mxu0 0.0
      %2071 = vmatpush2.msra.mxu0 0.0
      %2072 = vmatprep.subr.mxu0 0.0
      %2073 = vmatpush2.msra.mxu0 0.0
      %2074 = vmatprep.subr.mxu0 0.0
      %2075 = vmatpush2.msra.mxu0 0.0
      %2076 = vmatprep.mubr.f32.mxu0 0.0
      %2077 = vmatmul.mubr.f32.gmra.mxu0 %v1940
      %v2078 = vpop.f32.mrf.mxu0
      %v2079 = vadd.f32 0.0, %v2078
      %v2080 = vpop.f32.mrf.mxu0
      %2081 = vdwg.mxu0
      %v2082 = vmul.f32 %v2009, %v2009
      %v2083 = vsub.f32 %v2079, %v2082
      %v2084 = vmax.f32 %v2083, 0.0
      %v2085 = vadd.f32 %v2084, 1e-05
      %v2086 = vrsqrt.pop %v2085
      %v2087 = vld [vmem:[%s8] sm:$0xff]
      %v2088 = vmul.f32 %v2086, %v2087
      %v2089 = vld [vmem:[%s9] sm:$0xff]
      %v2090 = vmul.f32 %v2009, %v2088
      %v2091 = vsub.f32 %v2089, %v2090
      %2093 = vset.pattern.permute.xlu0 0
      %2094 = vperm.xlu0 %2093, %v2088
      %v2095 = vpop.permute.xlu0 %2094
      %v2097 = vmul.f32 %v1646, %v2095
      %v2098 = vmul.f32 %v1647, %v2095
      %v2099 = vmul.f32 %v1648, %v2095
      %2101 = vset.pattern.permute.xlu0 0
      %2102 = vperm.xlu0 %2101, %v2091
      %v2103 = vpop.permute.xlu0 %2102
      %v2105 = vadd.f32 %v2097, %v2103
      %v2106 = vadd.f32 %v2098, %v2103
      %v2107 = vadd.f32 %v2099, %v2103
      %2108 = vst [vmem:[%s386] sm:$0xff] %v2105
      %2109 = vst [vmem:[%s386 + $0x8] sm:$0xff] %v2106
      %2110 = vst.msk [vmem:[%s386 + $0x10] sm:$0xff] %vm394, %v2107
      %p2111 = scmp.lt.s32.totalorder %s22, 1
      %s2112 = scalar_select %p2111, %s22, 1
      %s2113 = smul.addr %s2112, 3
      %s2114 = smul.addr %s2113, 8
      %s2115 = scalar_lea.vmem %s11, %s2114
      // Predicated region
      $region65: #{_lambda_.1} parent=63 // pred_check
        %p2116 = pneg %p276
      $region66: #{_lambda_.1} parent=63 // pred_check_branch
        %2118 = sbr.rel (%p2116) target = $region68
      $region67: #{_lambda_.1} parent=63 // pred_region
        _
      $region68: #{_lambda_.1} parent=63 // pred_fallthru
        _
    $region64: #{_lambda_.1} parent=5 // pred_fallthru
      _
    %p2119 = scmp.le.s32.totalorder 2, %s17
    // Predicated region
    $region69: #{_lambda_.1} parent=5 // pred_check
      %p2120 = pneg %p2119
    $region70: #{_lambda_.1} parent=5 // pred_check_branch
      %2122 = sbr.rel (%p2120) target = $region72
    $region71: #{_lambda_.1} parent=5 // pred_region
      %s2123 = ssub.s32 %s17, 2
      // Predicated region
      $region73: #{_lambda_.1} parent=71 // pred_check
        %p2124 = pneg %p282
      $region74: #{_lambda_.1} parent=71 // pred_check_branch
        %2126 = sbr.rel (%p2124) target = $region76
      $region75: #{_lambda_.1} parent=71 // pred_region
        %p2127 = scmp.lt.s32.totalorder %s23, 1
        %s2128 = scalar_select %p2127, %s23, 1
        %s2129 = smul.addr %s2128, 3
        %s2130 = smul.addr %s2129, 8
        %s2131 = scalar_lea.vmem %s11, %s2130
      $region76: #{_lambda_.1} parent=71 // pred_fallthru
        _
    $region72: #{_lambda_.1} parent=5 // pred_fallthru
      _
  $region6: #{_lambda_.1} parent=0 // loop_footer
    %s21 = sadd.s32 1, %s17
  $region7: #{_lambda_.1} parent=0 // loop_footer_branch
    %16 = sbr.rel target = $region3
  $region8: #{_lambda_.1} parent=0 // loop_exit
    _

</llo_original>
